<compile_context>
chip_gen: v5e
topology: v5e:2x2
jax: 0.10.0
libtpu: 0.0.40
codegen_flags: <defaults>
</compile_context>

<pallas_src>
import functools

import numpy as np
import jax
import jax.numpy as jnp
from jax import lax
from jax.experimental import pallas as pl
from jax.experimental.pallas import tpu as pltpu

# ----------------------------- static config --------------------------------
IMG_LEN = 128                               # module img_len (smallest valid)
UP = 7                                      # nn.Upsample(scale_factor=7)
POOL_K = 128 // (32 // (IMG_LEN // 128))    # nn.AvgPool2d kernel (=4)
OUT_HW = (IMG_LEN * UP) // POOL_K           # 224 (CLIP input resolution)
HIDDEN = 256                                # synthetic encoder width (fills 256-wide MXU)
EMBED = 128                                 # synthetic CLIP embedding dim (lane friendly)
VOCAB = 512                                 # synthetic vocab
SEQ = 8                                     # synthetic tokenized seq len
N_TEXT = 4                                  # number of text prompts
PAD_TEXT = 128                              # lane-padded logits width
W_LOSS = 0.5                                # self.w
_EPS = 1e-12


# ------------------------------ fused Pallas kernel ---------------------------
def _clip_forward_kernel(x_ref, p_ref, w1_ref, b1_ref, w2_ref, ones_ref,
                         txt_ref, consts_ref, o_ref):
    """Fused CLIPLoss forward (all bf16-in / f32-acc MXU matmuls):
         S   = sum_c X_c @ W1'_c                 (128,256)   [W1'_c = P^T @ W1_c, host-folded]
         h   = relu(P @ S + b1)                  (224,256)   [== relu(AvgPool(Up(x)) @ W1 + b1)]
         img = (ones_row @ h) @ W2 ; L2-normalize            [mean-pool scale absorbed by norm]
         o   = a - b * (img @ txt_n^T)           (1,128)     [a = w, b = w*scale/100]
    """
    s = jnp.dot(x_ref[0], w1_ref[0], preferred_element_type=jnp.float32)
    s = s + jnp.dot(x_ref[1], w1_ref[1], preferred_element_type=jnp.float32)
    s = s + jnp.dot(x_ref[2], w1_ref[2], preferred_element_type=jnp.float32)   # (128,256) f32

    h = jnp.dot(p_ref[...], s.astype(jnp.bfloat16),
                preferred_element_type=jnp.float32)                            # (224,256) f32
    h = jnp.maximum(h + b1_ref[...], 0.0)

    pooled = jnp.dot(ones_ref[...], h.astype(jnp.bfloat16),
                     preferred_element_type=jnp.float32)                       # (1,256) f32
    img = jnp.dot(pooled.astype(jnp.bfloat16), w2_ref[...],
                  preferred_element_type=jnp.float32)                          # (1,128) f32
    img = img * lax.rsqrt(jnp.sum(img * img, axis=-1, keepdims=True) + _EPS)

    dotv = jnp.dot(img.astype(jnp.bfloat16), txt_ref[...],
                   preferred_element_type=jnp.float32)                         # (1,128) f32
    o_ref[...] = consts_ref[0] - consts_ref[1] * dotv


_VMEM = pl.BlockSpec(memory_space=pltpu.MemorySpace.VMEM)
_SMEM = pl.BlockSpec(memory_space=pltpu.MemorySpace.SMEM)


@functools.partial(jax.jit, static_argnames=("n_text",))
def _clip_loss_forward(image, P, w1, b1, w2, ones_row, txtT, consts, *, n_text):
    x = jnp.reshape(image, (3, IMG_LEN, IMG_LEN)).astype(jnp.bfloat16)
    sim_pad = pl.pallas_call(
        _clip_forward_kernel,
        out_shape=jax.ShapeDtypeStruct((1, PAD_TEXT), jnp.float32),
        in_specs=[_VMEM, _VMEM, _VMEM, _VMEM, _VMEM, _VMEM, _VMEM, _SMEM],
        out_specs=_VMEM,
    )(x, P, w1, b1, w2, ones_row, txtT, consts)
    return sim_pad[:, :n_text]


# ------------------------------- host-side setup ------------------------------
def _build_resample_matrix():
    """P[o, i] = (# upsampled taps in pool window o coming from input i) / POOL_K.
       out = P @ x @ P^T  ==  AvgPool2d(POOL_K)(Upsample(x7, nearest)(x))  exactly.
       Entries are multiples of 1/4 -> exact in bf16."""
    P = np.zeros((OUT_HW, IMG_LEN), np.float32)
    for o in range(OUT_HW):
        for t in range(POOL_K):
            P[o, (o * POOL_K + t) // UP] += 1.0 / POOL_K
    return P


class CLIPLossPallas:
    """Synthetic-weight JAX/Pallas equivalent of CLIPLoss.forward."""

    def __init__(self, img_len, text_tokens, w, key):
        assert img_len == IMG_LEN
        k = jax.random.split(key, 4)

        P_np = _build_resample_matrix()
        self.P = jnp.asarray(P_np, jnp.bfloat16)                     # (224,128) bf16 (exact)

        # synthetic image encoder (CLIP stand-in); fold the resample transpose into W1:
        #   W1'_c = P^T @ W1_c   so   R_c @ W1_c == X_c @ W1'_c  with R_c = P X_c P^T.
        w1_raw = (jax.random.normal(k[0], (3, OUT_HW, HIDDEN), jnp.float32)
                  * (1.0 / np.sqrt(3 * OUT_HW)))
        PT = jnp.asarray(P_np.T)                                     # (128,224) f32
        self.w1 = jnp.einsum("io,coh->cih", PT, w1_raw).astype(jnp.bfloat16)  # (3,128,256)
        self.b1 = jnp.zeros((1, HIDDEN), jnp.float32)
        self.w2 = (jax.random.normal(k[1], (HIDDEN, EMBED), jnp.float32)
                   * (1.0 / np.sqrt(HIDDEN))).astype(jnp.bfloat16)   # (256,128) bf16
        # mean-pool over 224 rows as an MXU matmul; the uniform 1/224 scale is absorbed
        # exactly by the L2 normalization that follows.
        self.ones_row = jnp.full((1, OUT_HW), 1.0 / OUT_HW, jnp.bfloat16)

        # synthetic text encoder params
        self.tok_embed = jax.random.normal(k[2], (VOCAB, HIDDEN), jnp.float32) * 0.02
        self.w_text = (jax.random.normal(k[3], (HIDDEN, EMBED), jnp.float32)
                       * (1.0 / np.sqrt(HIDDEN)))

        logit_scale = float(np.log(1.0 / 0.07))                      # CLIP init
        scale = min(float(np.exp(logit_scale)), 100.0)               # CLIP clamps exp()
        # epilogue constants folded host-side: o = a - b * (img @ txtT)
        self.consts = jnp.array([float(w), float(w) * scale / 100.0], jnp.float32)

        self.text = text_tokens                                      # (N_TEXT, SEQ) int32
        self.txtT = self._encode_text(text_tokens)                   # cached static branch

    def _encode_text(self, text):
        """Synthetic CLIP text tower: embed -> mean pool -> project -> L2-norm.
        Static w.r.t. forward(); precomputed once and cached as a normalized,
        transposed, lane-padded (EMBED, PAD_TEXT) bf16 slab consumed by the kernel."""
        tok = jnp.take(self.tok_embed, text, axis=0)                 # (N, SEQ, HIDDEN)
        pooled = jnp.mean(tok, axis=1)                               # (N, HIDDEN)
        feat = pooled @ self.w_text                                  # (N, EMBED)
        feat = feat * lax.rsqrt(jnp.sum(feat * feat, axis=-1, keepdims=True) + _EPS)
        padded = jnp.zeros((PAD_TEXT, EMBED), jnp.float32).at[:feat.shape[0]].set(feat)
        return jnp.asarray(padded.T).astype(jnp.bfloat16)            # (EMBED, PAD_TEXT)

    def forward(self, image, text=None):
        if text is None:
            txtT, n_text = self.txtT, int(self.text.shape[0])
        else:
            txtT, n_text = self._encode_text(text), int(text.shape[0])
        return _clip_loss_forward(image, self.P, self.w1, self.b1, self.w2,
                                  self.ones_row, txtT, self.consts, n_text=n_text)

    # pure-JAX reference mirroring the kernel math (same folding / bf16 cast points)
    def reference_forward(self, image):
        x = jnp.reshape(image, (3, IMG_LEN, IMG_LEN)).astype(jnp.bfloat16)
        s = sum(jnp.dot(x[c], self.w1[c], preferred_element_type=jnp.float32)
                for c in range(3))                                               # (128,256)
        h = jnp.dot(self.P, s.astype(jnp.bfloat16), preferred_element_type=jnp.float32)
        h = jnp.maximum(h + self.b1, 0.0)                                        # (224,256)
        pooled = jnp.dot(self.ones_row, h.astype(jnp.bfloat16),
                         preferred_element_type=jnp.float32)                     # (1,256)
        img = jnp.dot(pooled.astype(jnp.bfloat16), self.w2,
                      preferred_element_type=jnp.float32)                        # (1,128)
        img = img * lax.rsqrt(jnp.sum(img * img, axis=-1, keepdims=True) + _EPS)
        dotv = jnp.dot(img.astype(jnp.bfloat16), self.txtT,
                       preferred_element_type=jnp.float32)                       # (1,128)
        return (self.consts[0] - self.consts[1] * dotv)[:, :N_TEXT]


if __name__ == "__main__":
    key = jax.random.PRNGKey(0)
    k_img, k_txt, k_param = jax.random.split(key, 3)

    image = jax.random.normal(k_img, (3, IMG_LEN, IMG_LEN), jnp.float32)
    text_tokens = jax.random.randint(k_txt, (N_TEXT, SEQ), 0, VOCAB, jnp.int32)

    loss_mod = CLIPLossPallas(IMG_LEN, text_tokens, W_LOSS, k_param)

    sim = loss_mod.forward(image)
    sim = jax.block_until_ready(sim)

    assert sim.shape == (1, N_TEXT) and sim.dtype == jnp.float32
    assert bool(jnp.all(jnp.isfinite(sim)))

    ref = jax.block_until_ready(loss_mod.reference_forward(image))
    assert bool(jnp.allclose(sim, ref, atol=1e-2, rtol=0.0)), (np.asarray(sim), np.asarray(ref))

    print("KERNEL_OK")
</pallas_src>

<mosaic_0001>
module attributes {stable_mosaic.version = 11 : i64} {
  func.func @_clip_forward_kernel(%arg0: memref<3x128x128xbf16, #tpu.memory_space<vmem>>, %arg1: memref<224x128xbf16, #tpu.memory_space<vmem>>, %arg2: memref<3x128x256xbf16, #tpu.memory_space<vmem>>, %arg3: memref<1x256xf32, #tpu.memory_space<vmem>>, %arg4: memref<256x128xbf16, #tpu.memory_space<vmem>>, %arg5: memref<1x224xbf16, #tpu.memory_space<vmem>>, %arg6: memref<128x128xbf16, #tpu.memory_space<vmem>>, %arg7: memref<2xf32, #tpu.memory_space<smem>>, %arg8: memref<1x128xf32, #tpu.memory_space<vmem>>) attributes {dimension_semantics = [], scalar_prefetch = 0 : i64, scratch_operands = 0 : i64, tpu.core_type = #tpu.core_type<tc>} {
    %c0 = arith.constant 0 : index
    %c0_0 = arith.constant 0 : index
    %c0_1 = arith.constant 0 : index
    %0 = vector.load %arg0[%c0, %c0_0, %c0_1] : memref<3x128x128xbf16, #tpu.memory_space<vmem>>, vector<1x128x128xbf16>
    %1 = vector.shape_cast %0 : vector<1x128x128xbf16> to vector<128x128xbf16>
    %c0_2 = arith.constant 0 : index
    %c0_3 = arith.constant 0 : index
    %c0_4 = arith.constant 0 : index
    %2 = vector.load %arg2[%c0_2, %c0_3, %c0_4] : memref<3x128x256xbf16, #tpu.memory_space<vmem>>, vector<1x128x256xbf16>
    %3 = vector.shape_cast %2 : vector<1x128x256xbf16> to vector<128x256xbf16>
    %cst = arith.constant dense<0.000000e+00> : vector<128x256xf32>
    %4 = tpu.matmul %1, %3, %cst {dimension_numbers = #tpu.dot_dimension_numbers<[1], [0], [0], [1], [0, 0, 1, 1], [], []>} : vector<128x128xbf16>, vector<128x256xbf16>, vector<128x256xf32> -> vector<128x256xf32>
    %c1 = arith.constant 1 : index
    %c0_5 = arith.constant 0 : index
    %c0_6 = arith.constant 0 : index
    %5 = vector.load %arg0[%c1, %c0_5, %c0_6] : memref<3x128x128xbf16, #tpu.memory_space<vmem>>, vector<1x128x128xbf16>
    %6 = vector.shape_cast %5 : vector<1x128x128xbf16> to vector<128x128xbf16>
    %c1_7 = arith.constant 1 : index
    %c0_8 = arith.constant 0 : index
    %c0_9 = arith.constant 0 : index
    %7 = vector.load %arg2[%c1_7, %c0_8, %c0_9] : memref<3x128x256xbf16, #tpu.memory_space<vmem>>, vector<1x128x256xbf16>
    %8 = vector.shape_cast %7 : vector<1x128x256xbf16> to vector<128x256xbf16>
    %cst_10 = arith.constant dense<0.000000e+00> : vector<128x256xf32>
    %9 = tpu.matmul %6, %8, %cst_10 {dimension_numbers = #tpu.dot_dimension_numbers<[1], [0], [0], [1], [0, 0, 1, 1], [], []>} : vector<128x128xbf16>, vector<128x256xbf16>, vector<128x256xf32> -> vector<128x256xf32>
    %10 = arith.addf %4, %9 : vector<128x256xf32>
    %c2 = arith.constant 2 : index
    %c0_11 = arith.constant 0 : index
    %c0_12 = arith.constant 0 : index
    %11 = vector.load %arg0[%c2, %c0_11, %c0_12] : memref<3x128x128xbf16, #tpu.memory_space<vmem>>, vector<1x128x128xbf16>
    %12 = vector.shape_cast %11 : vector<1x128x128xbf16> to vector<128x128xbf16>
    %c2_13 = arith.constant 2 : index
    %c0_14 = arith.constant 0 : index
    %c0_15 = arith.constant 0 : index
    %13 = vector.load %arg2[%c2_13, %c0_14, %c0_15] : memref<3x128x256xbf16, #tpu.memory_space<vmem>>, vector<1x128x256xbf16>
    %14 = vector.shape_cast %13 : vector<1x128x256xbf16> to vector<128x256xbf16>
    %cst_16 = arith.constant dense<0.000000e+00> : vector<128x256xf32>
    %15 = tpu.matmul %12, %14, %cst_16 {dimension_numbers = #tpu.dot_dimension_numbers<[1], [0], [0], [1], [0, 0, 1, 1], [], []>} : vector<128x128xbf16>, vector<128x256xbf16>, vector<128x256xf32> -> vector<128x256xf32>
    %16 = arith.addf %10, %15 : vector<128x256xf32>
    %c0_17 = arith.constant 0 : index
    %c0_18 = arith.constant 0 : index
    %17 = vector.load %arg1[%c0_17, %c0_18] : memref<224x128xbf16, #tpu.memory_space<vmem>>, vector<224x128xbf16>
    %18 = arith.truncf %16 : vector<128x256xf32> to vector<128x256xbf16>
    %cst_19 = arith.constant dense<0.000000e+00> : vector<224x256xf32>
    %19 = tpu.matmul %17, %18, %cst_19 {dimension_numbers = #tpu.dot_dimension_numbers<[1], [0], [0], [1], [0, 0, 1, 1], [], []>} : vector<224x128xbf16>, vector<128x256xbf16>, vector<224x256xf32> -> vector<224x256xf32>
    %c0_20 = arith.constant 0 : index
    %c0_21 = arith.constant 0 : index
    %20 = vector.load %arg3[%c0_20, %c0_21] : memref<1x256xf32, #tpu.memory_space<vmem>>, vector<1x256xf32>
    %21 = vector.broadcast %20 : vector<1x256xf32> to vector<224x256xf32>
    %22 = arith.addf %19, %21 : vector<224x256xf32>
    %cst_22 = arith.constant 0.000000e+00 : f32
    %23 = vector.broadcast %cst_22 : f32 to vector<224x256xf32>
    %24 = arith.maximumf %22, %23 : vector<224x256xf32>
    %c0_23 = arith.constant 0 : index
    %c0_24 = arith.constant 0 : index
    %25 = vector.load %arg5[%c0_23, %c0_24] : memref<1x224xbf16, #tpu.memory_space<vmem>>, vector<1x224xbf16>
    %26 = arith.truncf %24 : vector<224x256xf32> to vector<224x256xbf16>
    %cst_25 = arith.constant dense<0.000000e+00> : vector<1x256xf32>
    %27 = tpu.matmul %25, %26, %cst_25 {dimension_numbers = #tpu.dot_dimension_numbers<[1], [0], [0], [1], [0, 0, 1, 1], [], []>} : vector<1x224xbf16>, vector<224x256xbf16>, vector<1x256xf32> -> vector<1x256xf32>
    %28 = arith.truncf %27 : vector<1x256xf32> to vector<1x256xbf16>
    %c0_26 = arith.constant 0 : index
    %c0_27 = arith.constant 0 : index
    %29 = vector.load %arg4[%c0_26, %c0_27] : memref<256x128xbf16, #tpu.memory_space<vmem>>, vector<256x128xbf16>
    %cst_28 = arith.constant dense<0.000000e+00> : vector<1x128xf32>
    %30 = tpu.matmul %28, %29, %cst_28 {dimension_numbers = #tpu.dot_dimension_numbers<[1], [0], [0], [1], [0, 0, 1, 1], [], []>} : vector<1x256xbf16>, vector<256x128xbf16>, vector<1x128xf32> -> vector<1x128xf32>
    %31 = arith.mulf %30, %30 : vector<1x128xf32>
    %cst_29 = arith.constant dense<0.000000e+00> : vector<1xf32>
    %32 = vector.multi_reduction <add>, %31, %cst_29 [1] : vector<1x128xf32> to vector<1xf32>
    %33 = vector.shape_cast %32 : vector<1xf32> to vector<1x1xf32>
    %cst_30 = arith.constant 9.99999996E-13 : f32
    %34 = vector.broadcast %cst_30 : f32 to vector<1x1xf32>
    %35 = arith.addf %33, %34 : vector<1x1xf32>
    %36 = math.rsqrt %35 : vector<1x1xf32>
    %37 = vector.broadcast %36 : vector<1x1xf32> to vector<1x128xf32>
    %38 = arith.mulf %30, %37 : vector<1x128xf32>
    %39 = arith.truncf %38 : vector<1x128xf32> to vector<1x128xbf16>
    %c0_31 = arith.constant 0 : index
    %c0_32 = arith.constant 0 : index
    %40 = vector.load %arg6[%c0_31, %c0_32] : memref<128x128xbf16, #tpu.memory_space<vmem>>, vector<128x128xbf16>
    %cst_33 = arith.constant dense<0.000000e+00> : vector<1x128xf32>
    %41 = tpu.matmul %39, %40, %cst_33 {dimension_numbers = #tpu.dot_dimension_numbers<[1], [0], [0], [1], [0, 0, 1, 1], [], []>} : vector<1x128xbf16>, vector<128x128xbf16>, vector<1x128xf32> -> vector<1x128xf32>
    %c0_34 = arith.constant 0 : index
    %42 = memref.load %arg7[%c0_34] : memref<2xf32, #tpu.memory_space<smem>>
    %c1_35 = arith.constant 1 : index
    %43 = memref.load %arg7[%c1_35] : memref<2xf32, #tpu.memory_space<smem>>
    %44 = vector.broadcast %43 : f32 to vector<1x128xf32>
    %45 = arith.mulf %44, %41 : vector<1x128xf32>
    %46 = vector.broadcast %42 : f32 to vector<1x128xf32>
    %47 = arith.subf %46, %45 : vector<1x128xf32>
    %c0_36 = arith.constant 0 : index
    %c0_37 = arith.constant 0 : index
    %48 = vector.load %arg8[%c0_36, %c0_37] : memref<1x128xf32, #tpu.memory_space<vmem>>, vector<1x128xf32>
    tpu.vector_store %arg8[%c0_36, %c0_37], %47 {strides = array<i32>} : memref<1x128xf32, #tpu.memory_space<vmem>>, vector<1x128xf32>,
    return
  }
}

</mosaic_0001>

<llo_original>
// kernel: _clip_loss_forward.1
$region0: #{_clip_loss_forward.1}
  #allocation0 [shape = 'u32[]', space=smem, size = 0x4, offset = 0x4, fixed_abs, tag = 'smem constant byte address 0x4 - core index']
  #allocation1 [shape = 'u32[72,128]{1,0:T(1,128)}', space=vmem, size = 0x9000, scoped, tag = 'internal scratch']
  %s0 = inlined_call_operand.vmem [shape: bf16[3,128,128], index: 0, kind: input, shape index: {}]
  %s1 = inlined_call_operand.hbm [shape: bf16[224,128], index: 1, kind: input, shape index: {}]
  %s2 = inlined_call_operand.vmem [shape: bf16[3,128,256], index: 2, kind: input, shape index: {}]
  %s3 = inlined_call_operand.hbm [shape: f32[1,256], index: 3, kind: input, shape index: {}]
  %s4 = inlined_call_operand.vmem [shape: bf16[256,128], index: 4, kind: input, shape index: {}]
  %s5 = inlined_call_operand.hbm [shape: bf16[1,224], index: 5, kind: input, shape index: {}]
  %s6 = inlined_call_operand.vmem [shape: bf16[128,128], index: 6, kind: input, shape index: {}]
  %s7 = inlined_call_operand.vmem [shape: f32[2], index: 7, kind: input, shape index: {}]
  %s8 = inlined_call_operand.hbm [shape: f32[1,128], index: 8, kind: output, shape index: {}]
  %s9 = sld [smem:[#allocation0]]
  $region58: #{_clip_loss_forward.1} parent=0
    _
  %s11 = ssub.s32 1, %s9
  %s12 = scalar_select 0, %s11, %s9
  $region1: #{_clip_loss_forward.1} parent=0
    #allocation2 [shape = 'u8[57344]{0}', space=vmem, size = 0xe000, scoped, tag = 'input window, operand 1, single buffered']
    #allocation3 [shape = 's32[1]{0}', space=sflag, size = 0x4, scoped, tag = 'scoped memory for _clip_loss_forward.1']
    #allocation4 [shape = 's32[1]{0}', space=sflag, size = 0x4, scoped, tag = 'scoped memory for _clip_loss_forward.1']
    #allocation5 [shape = 's32[1]{0}', space=sflag, size = 0x4, scoped, tag = 'scoped memory for _clip_loss_forward.1']
    #allocation6 [shape = 'u8[1024]{0}', space=vmem, size = 0x400, scoped, tag = 'input window, operand 3, single buffered']
    #allocation7 [shape = 's32[1]{0}', space=sflag, size = 0x4, scoped, tag = 'scoped memory for _clip_loss_forward.1']
    #allocation8 [shape = 'u8[1024]{0}', space=vmem, size = 0x400, scoped, tag = 'input window, operand 5, single buffered']
    #allocation9 [shape = 'u8[512]{0}', space=smem, size = 0x200, scoped, tag = 'input window, operand 7, single buffered']
    #allocation10 [shape = 'u8[512]{0}', space=vmem, size = 0x400, scoped, tag = 'output window, operand 0, single buffered']
    %13 = vsyncpa [#allocation3], 0
    %14 = vsyncpa [#allocation7], 0
    %15 = vsyncpa [#allocation5], 0
    %16 = vsyncpa [#allocation4], 0
    // Predicated region
    $region2: #{_clip_loss_forward.1} parent=1 // pred_check
      _
    $region3: #{_clip_loss_forward.1} parent=1 // pred_check_branch
      %18 = sbr.rel (0) target = $region5
    $region4: #{_clip_loss_forward.1} parent=1 // pred_region
      _
    $region5: #{_clip_loss_forward.1} parent=1 // pred_fallthru
      _
    // Predicated region
    $region6: #{_clip_loss_forward.1} parent=1 // pred_check
      _
    $region7: #{_clip_loss_forward.1} parent=1 // pred_check_branch
      %20 = sbr.rel (0) target = $region9
    $region8: #{_clip_loss_forward.1} parent=1 // pred_region
      %22 = vsyncadd [#allocation3], 0
      %s23 = sshll.u32 %s1, 4
      %s24 = int_to_ptr.hbm [resolvable:$true] %s23
      %s25 = sshll.u32 [#allocation2], 4
      %s26 = int_to_ptr.vmem [resolvable:$true] %s25
      %31 = dma.hbm_to_vmem [thread:$0]  %s24, 1792, %s26, [#allocation3], 64, 64, 4
    $region9: #{_clip_loss_forward.1} parent=1 // pred_fallthru
      _
    // Predicated region
    $region10: #{_clip_loss_forward.1} parent=1 // pred_check
      _
    $region11: #{_clip_loss_forward.1} parent=1 // pred_check_branch
      %33 = sbr.rel (0) target = $region13
    $region12: #{_clip_loss_forward.1} parent=1 // pred_region
      _
    $region13: #{_clip_loss_forward.1} parent=1 // pred_fallthru
      _
    // Predicated region
    $region14: #{_clip_loss_forward.1} parent=1 // pred_check
      _
    $region15: #{_clip_loss_forward.1} parent=1 // pred_check_branch
      %35 = sbr.rel (0) target = $region17
    $region16: #{_clip_loss_forward.1} parent=1 // pred_region
      %37 = vsyncadd [#allocation7], 0
      %s39 = sshll.u32 %s3, 4
      %s40 = int_to_ptr.hbm [resolvable:$true] %s39
      %s41 = sshll.u32 [#allocation6], 4
      %s42 = int_to_ptr.vmem [resolvable:$true] %s41
      %44 = dma.hbm_to_vmem [thread:$0]  %s40, 32, %s42, [#allocation7]
    $region17: #{_clip_loss_forward.1} parent=1 // pred_fallthru
      _
    // Predicated region
    $region18: #{_clip_loss_forward.1} parent=1 // pred_check
      _
    $region19: #{_clip_loss_forward.1} parent=1 // pred_check_branch
      %46 = sbr.rel (0) target = $region21
    $region20: #{_clip_loss_forward.1} parent=1 // pred_region
      _
    $region21: #{_clip_loss_forward.1} parent=1 // pred_fallthru
      _
    // Predicated region
    $region22: #{_clip_loss_forward.1} parent=1 // pred_check
      _
    $region23: #{_clip_loss_forward.1} parent=1 // pred_check_branch
      %48 = sbr.rel (0) target = $region25
    $region24: #{_clip_loss_forward.1} parent=1 // pred_region
      %50 = vsyncadd [#allocation7], 0
      %s52 = sshll.u32 %s5, 4
      %s53 = int_to_ptr.hbm [resolvable:$true] %s52
      %s54 = sshll.u32 [#allocation8], 4
      %s55 = int_to_ptr.vmem [resolvable:$true] %s54
      %57 = dma.hbm_to_vmem [thread:$0]  %s53, 32, %s55, [#allocation7]
    $region25: #{_clip_loss_forward.1} parent=1 // pred_fallthru
      _
    // Predicated region
    $region26: #{_clip_loss_forward.1} parent=1 // pred_check
      _
    $region27: #{_clip_loss_forward.1} parent=1 // pred_check_branch
      %59 = sbr.rel (0) target = $region29
    $region28: #{_clip_loss_forward.1} parent=1 // pred_region
      _
    $region29: #{_clip_loss_forward.1} parent=1 // pred_fallthru
      _
    // Predicated region
    $region30: #{_clip_loss_forward.1} parent=1 // pred_check
      _
    $region31: #{_clip_loss_forward.1} parent=1 // pred_check_branch
      %61 = sbr.rel (0) target = $region33
    $region32: #{_clip_loss_forward.1} parent=1 // pred_region
      %63 = vsyncadd [#allocation5], 0
      %s65 = sshll.u32 %s7, 4
      %s66 = int_to_ptr.vmem [resolvable:$true] %s65
      %68 = dma.vmem_to_smem %s66, 16, [#allocation9], [#allocation5]
    $region33: #{_clip_loss_forward.1} parent=1 // pred_fallthru
      _
    // Predicated region
    $region34: #{_clip_loss_forward.1} parent=1 // pred_check
      _
    $region35: #{_clip_loss_forward.1} parent=1 // pred_check_branch
      %70 = sbr.rel (0) target = $region37
    $region36: #{_clip_loss_forward.1} parent=1 // pred_region
      %72 = dma.done [#allocation3], 1792
    $region37: #{_clip_loss_forward.1} parent=1 // pred_fallthru
      _
    // Predicated region
    $region38: #{_clip_loss_forward.1} parent=1 // pred_check
      _
    $region39: #{_clip_loss_forward.1} parent=1 // pred_check_branch
      %74 = sbr.rel (0) target = $region41
    $region40: #{_clip_loss_forward.1} parent=1 // pred_region
      %76 = dma.done [#allocation7], 32
    $region41: #{_clip_loss_forward.1} parent=1 // pred_fallthru
      _
    // Predicated region
    $region42: #{_clip_loss_forward.1} parent=1 // pred_check
      _
    $region43: #{_clip_loss_forward.1} parent=1 // pred_check_branch
      %78 = sbr.rel (0) target = $region45
    $region44: #{_clip_loss_forward.1} parent=1 // pred_region
      %80 = dma.done [#allocation7], 32
    $region45: #{_clip_loss_forward.1} parent=1 // pred_fallthru
      _
    // Predicated region
    $region46: #{_clip_loss_forward.1} parent=1 // pred_check
      _
    $region47: #{_clip_loss_forward.1} parent=1 // pred_check_branch
      %82 = sbr.rel (0) target = $region49
    $region48: #{_clip_loss_forward.1} parent=1 // pred_region
      %84 = dma.done [#allocation5], 16
    $region49: #{_clip_loss_forward.1} parent=1 // pred_fallthru
      _
    %85 = sfence
    %v87 = vld [vmem:[%s0] sm:$0xf]
    %v88 = vld [vmem:[%s0 + $0x4] sm:$0xf]
    %v89 = vld [vmem:[%s0 + $0x8] sm:$0xf]
    %v90 = vld [vmem:[%s0 + $0xc] sm:$0xf]
    %v91 = vld [vmem:[%s0 + $0x10] sm:$0xf]
    %v92 = vld [vmem:[%s0 + $0x14] sm:$0xf]
    %v93 = vld [vmem:[%s0 + $0x18] sm:$0xf]
    %v94 = vld [vmem:[%s0 + $0x1c] sm:$0xf]
    %v95 = vld [vmem:[%s0 + $0x20] sm:$0xf]
    %v96 = vld [vmem:[%s0 + $0x24] sm:$0xf]
    %v97 = vld [vmem:[%s0 + $0x28] sm:$0xf]
    %v98 = vld [vmem:[%s0 + $0x2c] sm:$0xf]
    %v99 = vld [vmem:[%s0 + $0x30] sm:$0xf]
    %v100 = vld [vmem:[%s0 + $0x34] sm:$0xf]
    %v101 = vld [vmem:[%s0 + $0x38] sm:$0xf]
    %v102 = vld [vmem:[%s0 + $0x3c] sm:$0xf]
    %v103 = vld [vmem:[%s2] sm:$0xff]
    %v104 = vld [vmem:[%s2 + $0x8] sm:$0xff]
    %v105 = vld [vmem:[%s2 + $0x10] sm:$0xff]
    %v106 = vld [vmem:[%s2 + $0x18] sm:$0xff]
    %v107 = vld [vmem:[%s2 + $0x20] sm:$0xff]
    %v108 = vld [vmem:[%s2 + $0x28] sm:$0xff]
    %v109 = vld [vmem:[%s2 + $0x30] sm:$0xff]
    %v110 = vld [vmem:[%s2 + $0x38] sm:$0xff]
    %v111 = vld [vmem:[%s2 + $0x40] sm:$0xff]
    %v112 = vld [vmem:[%s2 + $0x48] sm:$0xff]
    %v113 = vld [vmem:[%s2 + $0x50] sm:$0xff]
    %v114 = vld [vmem:[%s2 + $0x58] sm:$0xff]
    %v115 = vld [vmem:[%s2 + $0x60] sm:$0xff]
    %v116 = vld [vmem:[%s2 + $0x68] sm:$0xff]
    %v117 = vld [vmem:[%s2 + $0x70] sm:$0xff]
    %v118 = vld [vmem:[%s2 + $0x78] sm:$0xff]
    %s119 = scalar_lea.vmem %s0, 64
    %v120 = vld [vmem:[%s119] sm:$0xf]
    %v121 = vld [vmem:[%s119 + $0x4] sm:$0xf]
    %v122 = vld [vmem:[%s119 + $0x8] sm:$0xf]
    %v123 = vld [vmem:[%s119 + $0xc] sm:$0xf]
    %v124 = vld [vmem:[%s119 + $0x10] sm:$0xf]
    %v125 = vld [vmem:[%s119 + $0x14] sm:$0xf]
    %v126 = vld [vmem:[%s119 + $0x18] sm:$0xf]
    %v127 = vld [vmem:[%s119 + $0x1c] sm:$0xf]
    %v128 = vld [vmem:[%s119 + $0x20] sm:$0xf]
    %v129 = vld [vmem:[%s119 + $0x24] sm:$0xf]
    %v130 = vld [vmem:[%s119 + $0x28] sm:$0xf]
    %v131 = vld [vmem:[%s119 + $0x2c] sm:$0xf]
    %v132 = vld [vmem:[%s119 + $0x30] sm:$0xf]
    %v133 = vld [vmem:[%s119 + $0x34] sm:$0xf]
    %v134 = vld [vmem:[%s119 + $0x38] sm:$0xf]
    %v135 = vld [vmem:[%s119 + $0x3c] sm:$0xf]
    %s136 = scalar_lea.vmem %s2, 128
    %v137 = vld [vmem:[%s136] sm:$0xff]
    %v138 = vld [vmem:[%s136 + $0x8] sm:$0xff]
    %v139 = vld [vmem:[%s136 + $0x10] sm:$0xff]
    %v140 = vld [vmem:[%s136 + $0x18] sm:$0xff]
    %v141 = vld [vmem:[%s136 + $0x20] sm:$0xff]
    %v142 = vld [vmem:[%s136 + $0x28] sm:$0xff]
    %v143 = vld [vmem:[%s136 + $0x30] sm:$0xff]
    %v144 = vld [vmem:[%s136 + $0x38] sm:$0xff]
    %v145 = vld [vmem:[%s136 + $0x40] sm:$0xff]
    %v146 = vld [vmem:[%s136 + $0x48] sm:$0xff]
    %v147 = vld [vmem:[%s136 + $0x50] sm:$0xff]
    %v148 = vld [vmem:[%s136 + $0x58] sm:$0xff]
    %v149 = vld [vmem:[%s136 + $0x60] sm:$0xff]
    %v150 = vld [vmem:[%s136 + $0x68] sm:$0xff]
    %v151 = vld [vmem:[%s136 + $0x70] sm:$0xff]
    %v152 = vld [vmem:[%s136 + $0x78] sm:$0xff]
    %v169 = vunpack.c.l.b16 %v120
    %v170 = vunpack.c.l.b16 %v121
    %v171 = vunpack.c.l.b16 %v122
    %v172 = vunpack.c.l.b16 %v123
    %v173 = vunpack.c.l.b16 %v124
    %v174 = vunpack.c.l.b16 %v125
    %v175 = vunpack.c.l.b16 %v126
    %v176 = vunpack.c.l.b16 %v127
    %v177 = vunpack.c.l.b16 %v128
    %v178 = vunpack.c.l.b16 %v129
    %v179 = vunpack.c.l.b16 %v130
    %v180 = vunpack.c.l.b16 %v131
    %v181 = vunpack.c.l.b16 %v132
    %v182 = vunpack.c.l.b16 %v133
    %v183 = vunpack.c.l.b16 %v134
    %v184 = vunpack.c.l.b16 %v135
    %v185 = vpack.c.b16 %v170, %v169
    %v186 = vpack.c.b16 %v172, %v171
    %v187 = vpack.c.b16 %v174, %v173
    %v188 = vpack.c.b16 %v176, %v175
    %v189 = vpack.c.b16 %v178, %v177
    %v190 = vpack.c.b16 %v180, %v179
    %v191 = vpack.c.b16 %v182, %v181
    %v192 = vpack.c.b16 %v184, %v183
    %v217 = vunpack.c.l.b16 %v137
    %v218 = vunpack.c.h.b16 %v137
    %v219 = vunpack.c.l.b16 %v138
    %v220 = vunpack.c.h.b16 %v138
    %v221 = vunpack.c.l.b16 %v139
    %v222 = vunpack.c.h.b16 %v139
    %v223 = vunpack.c.l.b16 %v140
    %v224 = vunpack.c.h.b16 %v140
    %v225 = vunpack.c.l.b16 %v141
    %v226 = vunpack.c.h.b16 %v141
    %v227 = vunpack.c.l.b16 %v142
    %v228 = vunpack.c.h.b16 %v142
    %v229 = vunpack.c.l.b16 %v143
    %v230 = vunpack.c.h.b16 %v143
    %v231 = vunpack.c.l.b16 %v144
    %v232 = vunpack.c.h.b16 %v144
    %v233 = vunpack.c.l.b16 %v145
    %v234 = vunpack.c.h.b16 %v145
    %v235 = vunpack.c.l.b16 %v146
    %v236 = vunpack.c.h.b16 %v146
    %v237 = vunpack.c.l.b16 %v147
    %v238 = vunpack.c.h.b16 %v147
    %v239 = vunpack.c.l.b16 %v148
    %v240 = vunpack.c.h.b16 %v148
    %v241 = vunpack.c.l.b16 %v149
    %v242 = vunpack.c.h.b16 %v149
    %v243 = vunpack.c.l.b16 %v150
    %v244 = vunpack.c.h.b16 %v150
    %v245 = vunpack.c.l.b16 %v151
    %v246 = vunpack.c.h.b16 %v151
    %v247 = vunpack.c.l.b16 %v152
    %v248 = vunpack.c.h.b16 %v152
    %v249 = vpack.c.b16 %v219, %v217
    %v250 = vpack.c.b16 %v220, %v218
    %v251 = vpack.c.b16 %v223, %v221
    %v252 = vpack.c.b16 %v224, %v222
    %v253 = vpack.c.b16 %v227, %v225
    %v254 = vpack.c.b16 %v228, %v226
    %v255 = vpack.c.b16 %v231, %v229
    %v256 = vpack.c.b16 %v232, %v230
    %v257 = vpack.c.b16 %v235, %v233
    %v258 = vpack.c.b16 %v236, %v234
    %v259 = vpack.c.b16 %v239, %v237
    %v260 = vpack.c.b16 %v240, %v238
    %v261 = vpack.c.b16 %v243, %v241
    %v262 = vpack.c.b16 %v244, %v242
    %v263 = vpack.c.b16 %v247, %v245
    %v264 = vpack.c.b16 %v248, %v246
    %281 = vmatpush.bf16.msra.mxu0 %v263
    %282 = vmatpush.bf16.msra.mxu0 %v261
    %283 = vmatpush.bf16.msra.mxu0 %v259
    %284 = vmatpush.bf16.msra.mxu0 %v257
    %285 = vmatpush.bf16.msra.mxu0 %v255
    %286 = vmatpush.bf16.msra.mxu0 %v253
    %287 = vmatpush.bf16.msra.mxu0 %v251
    %288 = vmatpush.bf16.msra.mxu0 %v249
    %289 = vmatmul.bf16.gmra.mxu0 %v185
    %v290 = vpop.f32.mrf.mxu0
    %v291 = vadd.f32 0.0, %v290
    %v292 = vpop.f32.mrf.mxu0
    %v293 = vadd.f32 0.0, %v292
    %294 = vmatmul.bf16.gmra.mxu0 %v186
    %v295 = vpop.f32.mrf.mxu0
    %v296 = vadd.f32 0.0, %v295
    %v297 = vpop.f32.mrf.mxu0
    %v298 = vadd.f32 0.0, %v297
    %299 = vmatmul.bf16.gmra.mxu0 %v187
    %v300 = vpop.f32.mrf.mxu0
    %v301 = vadd.f32 0.0, %v300
    %v302 = vpop.f32.mrf.mxu0
    %v303 = vadd.f32 0.0, %v302
    %304 = vmatmul.bf16.gmra.mxu0 %v188
    %v305 = vpop.f32.mrf.mxu0
    %v306 = vadd.f32 0.0, %v305
    %v307 = vpop.f32.mrf.mxu0
    %v308 = vadd.f32 0.0, %v307
    %309 = vmatmul.bf16.gmra.mxu0 %v189
    %v310 = vpop.f32.mrf.mxu0
    %v311 = vadd.f32 0.0, %v310
    %v312 = vpop.f32.mrf.mxu0
    %v313 = vadd.f32 0.0, %v312
    %314 = vmatmul.bf16.gmra.mxu0 %v190
    %v315 = vpop.f32.mrf.mxu0
    %v316 = vadd.f32 0.0, %v315
    %v317 = vpop.f32.mrf.mxu0
    %v318 = vadd.f32 0.0, %v317
    %319 = vmatmul.bf16.gmra.mxu0 %v191
    %v320 = vpop.f32.mrf.mxu0
    %v321 = vadd.f32 0.0, %v320
    %v322 = vpop.f32.mrf.mxu0
    %v323 = vadd.f32 0.0, %v322
    %324 = vmatmul.bf16.gmra.mxu0 %v192
    %v325 = vpop.f32.mrf.mxu0
    %v326 = vadd.f32 0.0, %v325
    %v327 = vpop.f32.mrf.mxu0
    %v328 = vadd.f32 0.0, %v327
    %329 = vdwg.mxu0
    %330 = vmatpush.bf16.msra.mxu0 %v264
    %331 = vmatpush.bf16.msra.mxu0 %v262
    %332 = vmatpush.bf16.msra.mxu0 %v260
    %333 = vmatpush.bf16.msra.mxu0 %v258
    %334 = vmatpush.bf16.msra.mxu0 %v256
    %335 = vmatpush.bf16.msra.mxu0 %v254
    %336 = vmatpush.bf16.msra.mxu0 %v252
    %337 = vmatpush.bf16.msra.mxu0 %v250
    %338 = vmatmul.bf16.gmra.mxu0 %v185
    %v339 = vpop.f32.mrf.mxu0
    %v340 = vadd.f32 0.0, %v339
    %v341 = vpop.f32.mrf.mxu0
    %v342 = vadd.f32 0.0, %v341
    %343 = vmatmul.bf16.gmra.mxu0 %v186
    %v344 = vpop.f32.mrf.mxu0
    %v345 = vadd.f32 0.0, %v344
    %v346 = vpop.f32.mrf.mxu0
    %v347 = vadd.f32 0.0, %v346
    %348 = vmatmul.bf16.gmra.mxu0 %v187
    %v349 = vpop.f32.mrf.mxu0
    %v350 = vadd.f32 0.0, %v349
    %v351 = vpop.f32.mrf.mxu0
    %v352 = vadd.f32 0.0, %v351
    %353 = vmatmul.bf16.gmra.mxu0 %v188
    %v354 = vpop.f32.mrf.mxu0
    %v355 = vadd.f32 0.0, %v354
    %v356 = vpop.f32.mrf.mxu0
    %v357 = vadd.f32 0.0, %v356
    %358 = vmatmul.bf16.gmra.mxu0 %v189
    %v359 = vpop.f32.mrf.mxu0
    %v360 = vadd.f32 0.0, %v359
    %v361 = vpop.f32.mrf.mxu0
    %v362 = vadd.f32 0.0, %v361
    %363 = vmatmul.bf16.gmra.mxu0 %v190
    %v364 = vpop.f32.mrf.mxu0
    %v365 = vadd.f32 0.0, %v364
    %v366 = vpop.f32.mrf.mxu0
    %v367 = vadd.f32 0.0, %v366
    %368 = vmatmul.bf16.gmra.mxu0 %v191
    %v369 = vpop.f32.mrf.mxu0
    %v370 = vadd.f32 0.0, %v369
    %v371 = vpop.f32.mrf.mxu0
    %v372 = vadd.f32 0.0, %v371
    %373 = vmatmul.bf16.gmra.mxu0 %v192
    %v374 = vpop.f32.mrf.mxu0
    %v375 = vadd.f32 0.0, %v374
    %v376 = vpop.f32.mrf.mxu0
    %v377 = vadd.f32 0.0, %v376
    %378 = vdwg.mxu0
    %v395 = vunpack.c.l.b16 %v87
    %v396 = vunpack.c.l.b16 %v88
    %v397 = vunpack.c.l.b16 %v89
    %v398 = vunpack.c.l.b16 %v90
    %v399 = vunpack.c.l.b16 %v91
    %v400 = vunpack.c.l.b16 %v92
    %v401 = vunpack.c.l.b16 %v93
    %v402 = vunpack.c.l.b16 %v94
    %v403 = vunpack.c.l.b16 %v95
    %v404 = vunpack.c.l.b16 %v96
    %v405 = vunpack.c.l.b16 %v97
    %v406 = vunpack.c.l.b16 %v98
    %v407 = vunpack.c.l.b16 %v99
    %v408 = vunpack.c.l.b16 %v100
    %v409 = vunpack.c.l.b16 %v101
    %v410 = vunpack.c.l.b16 %v102
    %v411 = vpack.c.b16 %v396, %v395
    %v412 = vpack.c.b16 %v398, %v397
    %v413 = vpack.c.b16 %v400, %v399
    %v414 = vpack.c.b16 %v402, %v401
    %v415 = vpack.c.b16 %v404, %v403
    %v416 = vpack.c.b16 %v406, %v405
    %v417 = vpack.c.b16 %v408, %v407
    %v418 = vpack.c.b16 %v410, %v409
    %v443 = vunpack.c.l.b16 %v103
    %v444 = vunpack.c.h.b16 %v103
    %v445 = vunpack.c.l.b16 %v104
    %v446 = vunpack.c.h.b16 %v104
    %v447 = vunpack.c.l.b16 %v105
    %v448 = vunpack.c.h.b16 %v105
    %v449 = vunpack.c.l.b16 %v106
    %v450 = vunpack.c.h.b16 %v106
    %v451 = vunpack.c.l.b16 %v107
    %v452 = vunpack.c.h.b16 %v107
    %v453 = vunpack.c.l.b16 %v108
    %v454 = vunpack.c.h.b16 %v108
    %v455 = vunpack.c.l.b16 %v109
    %v456 = vunpack.c.h.b16 %v109
    %v457 = vunpack.c.l.b16 %v110
    %v458 = vunpack.c.h.b16 %v110
    %v459 = vunpack.c.l.b16 %v111
    %v460 = vunpack.c.h.b16 %v111
    %v461 = vunpack.c.l.b16 %v112
    %v462 = vunpack.c.h.b16 %v112
    %v463 = vunpack.c.l.b16 %v113
    %v464 = vunpack.c.h.b16 %v113
    %v465 = vunpack.c.l.b16 %v114
    %v466 = vunpack.c.h.b16 %v114
    %v467 = vunpack.c.l.b16 %v115
    %v468 = vunpack.c.h.b16 %v115
    %v469 = vunpack.c.l.b16 %v116
    %v470 = vunpack.c.h.b16 %v116
    %v471 = vunpack.c.l.b16 %v117
    %v472 = vunpack.c.h.b16 %v117
    %v473 = vunpack.c.l.b16 %v118
    %v474 = vunpack.c.h.b16 %v118
    %v475 = vpack.c.b16 %v445, %v443
    %v476 = vpack.c.b16 %v446, %v444
    %v477 = vpack.c.b16 %v449, %v447
    %v478 = vpack.c.b16 %v450, %v448
    %v479 = vpack.c.b16 %v453, %v451
    %v480 = vpack.c.b16 %v454, %v452
    %v481 = vpack.c.b16 %v457, %v455
    %v482 = vpack.c.b16 %v458, %v456
    %v483 = vpack.c.b16 %v461, %v459
    %v484 = vpack.c.b16 %v462, %v460
    %v485 = vpack.c.b16 %v465, %v463
    %v486 = vpack.c.b16 %v466, %v464
    %v487 = vpack.c.b16 %v469, %v467
    %v488 = vpack.c.b16 %v470, %v468
    %v489 = vpack.c.b16 %v473, %v471
    %v490 = vpack.c.b16 %v474, %v472
    %507 = vmatpush.bf16.msra.mxu0 %v489
    %508 = vmatpush.bf16.msra.mxu0 %v487
    %509 = vmatpush.bf16.msra.mxu0 %v485
    %510 = vmatpush.bf16.msra.mxu0 %v483
    %511 = vmatpush.bf16.msra.mxu0 %v481
    %512 = vmatpush.bf16.msra.mxu0 %v479
    %513 = vmatpush.bf16.msra.mxu0 %v477
    %514 = vmatpush.bf16.msra.mxu0 %v475
    %515 = vmatmul.bf16.gmra.mxu0 %v411
    %v516 = vpop.f32.mrf.mxu0
    %v517 = vadd.f32 %v291, %v516
    %v518 = vpop.f32.mrf.mxu0
    %v519 = vadd.f32 %v293, %v518
    %520 = vmatmul.bf16.gmra.mxu0 %v412
    %v521 = vpop.f32.mrf.mxu0
    %v522 = vadd.f32 %v296, %v521
    %v523 = vpop.f32.mrf.mxu0
    %v524 = vadd.f32 %v298, %v523
    %525 = vmatmul.bf16.gmra.mxu0 %v413
    %v526 = vpop.f32.mrf.mxu0
    %v527 = vadd.f32 %v301, %v526
    %v528 = vpop.f32.mrf.mxu0
    %v529 = vadd.f32 %v303, %v528
    %530 = vmatmul.bf16.gmra.mxu0 %v414
    %v531 = vpop.f32.mrf.mxu0
    %v532 = vadd.f32 %v306, %v531
    %v533 = vpop.f32.mrf.mxu0
    %v534 = vadd.f32 %v308, %v533
    %535 = vmatmul.bf16.gmra.mxu0 %v415
    %v536 = vpop.f32.mrf.mxu0
    %v537 = vadd.f32 %v311, %v536
    %v538 = vpop.f32.mrf.mxu0
    %v539 = vadd.f32 %v313, %v538
    %540 = vmatmul.bf16.gmra.mxu0 %v416
    %v541 = vpop.f32.mrf.mxu0
    %v542 = vadd.f32 %v316, %v541
    %v543 = vpop.f32.mrf.mxu0
    %v544 = vadd.f32 %v318, %v543
    %545 = vmatmul.bf16.gmra.mxu0 %v417
    %v546 = vpop.f32.mrf.mxu0
    %v547 = vadd.f32 %v321, %v546
    %v548 = vpop.f32.mrf.mxu0
    %v549 = vadd.f32 %v323, %v548
    %550 = vmatmul.bf16.gmra.mxu0 %v418
    %v551 = vpop.f32.mrf.mxu0
    %v552 = vadd.f32 %v326, %v551
    %v553 = vpop.f32.mrf.mxu0
    %v554 = vadd.f32 %v328, %v553
    %555 = vdwg.mxu0
    %556 = vmatpush.bf16.msra.mxu0 %v490
    %557 = vmatpush.bf16.msra.mxu0 %v488
    %558 = vmatpush.bf16.msra.mxu0 %v486
    %559 = vmatpush.bf16.msra.mxu0 %v484
    %560 = vmatpush.bf16.msra.mxu0 %v482
    %561 = vmatpush.bf16.msra.mxu0 %v480
    %562 = vmatpush.bf16.msra.mxu0 %v478
    %563 = vmatpush.bf16.msra.mxu0 %v476
    %564 = vmatmul.bf16.gmra.mxu0 %v411
    %v565 = vpop.f32.mrf.mxu0
    %v566 = vadd.f32 %v340, %v565
    %v567 = vpop.f32.mrf.mxu0
    %v568 = vadd.f32 %v342, %v567
    %569 = vmatmul.bf16.gmra.mxu0 %v412
    %v570 = vpop.f32.mrf.mxu0
    %v571 = vadd.f32 %v345, %v570
    %v572 = vpop.f32.mrf.mxu0
    %v573 = vadd.f32 %v347, %v572
    %574 = vmatmul.bf16.gmra.mxu0 %v413
    %v575 = vpop.f32.mrf.mxu0
    %v576 = vadd.f32 %v350, %v575
    %v577 = vpop.f32.mrf.mxu0
    %v578 = vadd.f32 %v352, %v577
    %579 = vmatmul.bf16.gmra.mxu0 %v414
    %v580 = vpop.f32.mrf.mxu0
    %v581 = vadd.f32 %v355, %v580
    %v582 = vpop.f32.mrf.mxu0
    %v583 = vadd.f32 %v357, %v582
    %584 = vmatmul.bf16.gmra.mxu0 %v415
    %v585 = vpop.f32.mrf.mxu0
    %v586 = vadd.f32 %v360, %v585
    %v587 = vpop.f32.mrf.mxu0
    %v588 = vadd.f32 %v362, %v587
    %589 = vmatmul.bf16.gmra.mxu0 %v416
    %v590 = vpop.f32.mrf.mxu0
    %v591 = vadd.f32 %v365, %v590
    %v592 = vpop.f32.mrf.mxu0
    %v593 = vadd.f32 %v367, %v592
    %594 = vmatmul.bf16.gmra.mxu0 %v417
    %v595 = vpop.f32.mrf.mxu0
    %v596 = vadd.f32 %v370, %v595
    %v597 = vpop.f32.mrf.mxu0
    %v598 = vadd.f32 %v372, %v597
    %599 = vmatmul.bf16.gmra.mxu0 %v418
    %v600 = vpop.f32.mrf.mxu0
    %v601 = vadd.f32 %v375, %v600
    %v602 = vpop.f32.mrf.mxu0
    %v603 = vadd.f32 %v377, %v602
    %604 = vdwg.mxu0
    %s605 = scalar_lea.vmem %s0, 128
    %v606 = vld [vmem:[%s605] sm:$0xf]
    %v607 = vld [vmem:[%s605 + $0x4] sm:$0xf]
    %v608 = vld [vmem:[%s605 + $0x8] sm:$0xf]
    %v609 = vld [vmem:[%s605 + $0xc] sm:$0xf]
    %v610 = vld [vmem:[%s605 + $0x10] sm:$0xf]
    %v611 = vld [vmem:[%s605 + $0x14] sm:$0xf]
    %v612 = vld [vmem:[%s605 + $0x18] sm:$0xf]
    %v613 = vld [vmem:[%s605 + $0x1c] sm:$0xf]
    %v614 = vld [vmem:[%s605 + $0x20] sm:$0xf]
    %v615 = vld [vmem:[%s605 + $0x24] sm:$0xf]
    %v616 = vld [vmem:[%s605 + $0x28] sm:$0xf]
    %v617 = vld [vmem:[%s605 + $0x2c] sm:$0xf]
    %v618 = vld [vmem:[%s605 + $0x30] sm:$0xf]
    %v619 = vld [vmem:[%s605 + $0x34] sm:$0xf]
    %v620 = vld [vmem:[%s605 + $0x38] sm:$0xf]
    %v621 = vld [vmem:[%s605 + $0x3c] sm:$0xf]
    %s622 = scalar_lea.vmem %s2, 256
    %v623 = vld [vmem:[%s622] sm:$0xff]
    %v624 = vld [vmem:[%s622 + $0x8] sm:$0xff]
    %v625 = vld [vmem:[%s622 + $0x10] sm:$0xff]
    %v626 = vld [vmem:[%s622 + $0x18] sm:$0xff]
    %v627 = vld [vmem:[%s622 + $0x20] sm:$0xff]
    %v628 = vld [vmem:[%s622 + $0x28] sm:$0xff]
    %v629 = vld [vmem:[%s622 + $0x30] sm:$0xff]
    %v630 = vld [vmem:[%s622 + $0x38] sm:$0xff]
    %v631 = vld [vmem:[%s622 + $0x40] sm:$0xff]
    %v632 = vld [vmem:[%s622 + $0x48] sm:$0xff]
    %v633 = vld [vmem:[%s622 + $0x50] sm:$0xff]
    %v634 = vld [vmem:[%s622 + $0x58] sm:$0xff]
    %v635 = vld [vmem:[%s622 + $0x60] sm:$0xff]
    %v636 = vld [vmem:[%s622 + $0x68] sm:$0xff]
    %v637 = vld [vmem:[%s622 + $0x70] sm:$0xff]
    %v638 = vld [vmem:[%s622 + $0x78] sm:$0xff]
    %v655 = vunpack.c.l.b16 %v606
    %v656 = vunpack.c.l.b16 %v607
    %v657 = vunpack.c.l.b16 %v608
    %v658 = vunpack.c.l.b16 %v609
    %v659 = vunpack.c.l.b16 %v610
    %v660 = vunpack.c.l.b16 %v611
    %v661 = vunpack.c.l.b16 %v612
    %v662 = vunpack.c.l.b16 %v613
    %v663 = vunpack.c.l.b16 %v614
    %v664 = vunpack.c.l.b16 %v615
    %v665 = vunpack.c.l.b16 %v616
    %v666 = vunpack.c.l.b16 %v617
    %v667 = vunpack.c.l.b16 %v618
    %v668 = vunpack.c.l.b16 %v619
    %v669 = vunpack.c.l.b16 %v620
    %v670 = vunpack.c.l.b16 %v621
    %v671 = vpack.c.b16 %v656, %v655
    %v672 = vpack.c.b16 %v658, %v657
    %v673 = vpack.c.b16 %v660, %v659
    %v674 = vpack.c.b16 %v662, %v661
    %v675 = vpack.c.b16 %v664, %v663
    %v676 = vpack.c.b16 %v666, %v665
    %v677 = vpack.c.b16 %v668, %v667
    %v678 = vpack.c.b16 %v670, %v669
    %v703 = vunpack.c.l.b16 %v623
    %v704 = vunpack.c.h.b16 %v623
    %v705 = vunpack.c.l.b16 %v624
    %v706 = vunpack.c.h.b16 %v624
    %v707 = vunpack.c.l.b16 %v625
    %v708 = vunpack.c.h.b16 %v625
    %v709 = vunpack.c.l.b16 %v626
    %v710 = vunpack.c.h.b16 %v626
    %v711 = vunpack.c.l.b16 %v627
    %v712 = vunpack.c.h.b16 %v627
    %v713 = vunpack.c.l.b16 %v628
    %v714 = vunpack.c.h.b16 %v628
    %v715 = vunpack.c.l.b16 %v629
    %v716 = vunpack.c.h.b16 %v629
    %v717 = vunpack.c.l.b16 %v630
    %v718 = vunpack.c.h.b16 %v630
    %v719 = vunpack.c.l.b16 %v631
    %v720 = vunpack.c.h.b16 %v631
    %v721 = vunpack.c.l.b16 %v632
    %v722 = vunpack.c.h.b16 %v632
    %v723 = vunpack.c.l.b16 %v633
    %v724 = vunpack.c.h.b16 %v633
    %v725 = vunpack.c.l.b16 %v634
    %v726 = vunpack.c.h.b16 %v634
    %v727 = vunpack.c.l.b16 %v635
    %v728 = vunpack.c.h.b16 %v635
    %v729 = vunpack.c.l.b16 %v636
    %v730 = vunpack.c.h.b16 %v636
    %v731 = vunpack.c.l.b16 %v637
    %v732 = vunpack.c.h.b16 %v637
    %v733 = vunpack.c.l.b16 %v638
    %v734 = vunpack.c.h.b16 %v638
    %v735 = vpack.c.b16 %v705, %v703
    %v736 = vpack.c.b16 %v706, %v704
    %v737 = vpack.c.b16 %v709, %v707
    %v738 = vpack.c.b16 %v710, %v708
    %v739 = vpack.c.b16 %v713, %v711
    %v740 = vpack.c.b16 %v714, %v712
    %v741 = vpack.c.b16 %v717, %v715
    %v742 = vpack.c.b16 %v718, %v716
    %v743 = vpack.c.b16 %v721, %v719
    %v744 = vpack.c.b16 %v722, %v720
    %v745 = vpack.c.b16 %v725, %v723
    %v746 = vpack.c.b16 %v726, %v724
    %v747 = vpack.c.b16 %v729, %v727
    %v748 = vpack.c.b16 %v730, %v728
    %v749 = vpack.c.b16 %v733, %v731
    %v750 = vpack.c.b16 %v734, %v732
    %767 = vmatpush.bf16.msra.mxu0 %v749
    %768 = vmatpush.bf16.msra.mxu0 %v747
    %769 = vmatpush.bf16.msra.mxu0 %v745
    %770 = vmatpush.bf16.msra.mxu0 %v743
    %771 = vmatpush.bf16.msra.mxu0 %v741
    %772 = vmatpush.bf16.msra.mxu0 %v739
    %773 = vmatpush.bf16.msra.mxu0 %v737
    %774 = vmatpush.bf16.msra.mxu0 %v735
    %775 = vmatmul.bf16.gmra.mxu0 %v671
    %v776 = vpop.f32.mrf.mxu0
    %v777 = vadd.f32 0.0, %v776
    %v778 = vpop.f32.mrf.mxu0
    %v779 = vadd.f32 0.0, %v778
    %780 = vmatmul.bf16.gmra.mxu0 %v672
    %v781 = vpop.f32.mrf.mxu0
    %v782 = vadd.f32 0.0, %v781
    %v783 = vpop.f32.mrf.mxu0
    %v784 = vadd.f32 0.0, %v783
    %785 = vmatmul.bf16.gmra.mxu0 %v673
    %v786 = vpop.f32.mrf.mxu0
    %v787 = vadd.f32 0.0, %v786
    %v788 = vpop.f32.mrf.mxu0
    %v789 = vadd.f32 0.0, %v788
    %790 = vmatmul.bf16.gmra.mxu0 %v674
    %v791 = vpop.f32.mrf.mxu0
    %v792 = vadd.f32 0.0, %v791
    %v793 = vpop.f32.mrf.mxu0
    %v794 = vadd.f32 0.0, %v793
    %795 = vmatmul.bf16.gmra.mxu0 %v675
    %v796 = vpop.f32.mrf.mxu0
    %v797 = vadd.f32 0.0, %v796
    %v798 = vpop.f32.mrf.mxu0
    %v799 = vadd.f32 0.0, %v798
    %800 = vmatmul.bf16.gmra.mxu0 %v676
    %v801 = vpop.f32.mrf.mxu0
    %v802 = vadd.f32 0.0, %v801
    %v803 = vpop.f32.mrf.mxu0
    %v804 = vadd.f32 0.0, %v803
    %805 = vmatmul.bf16.gmra.mxu0 %v677
    %v806 = vpop.f32.mrf.mxu0
    %v807 = vadd.f32 0.0, %v806
    %v808 = vpop.f32.mrf.mxu0
    %v809 = vadd.f32 0.0, %v808
    %810 = vmatmul.bf16.gmra.mxu0 %v678
    %v811 = vpop.f32.mrf.mxu0
    %v812 = vadd.f32 0.0, %v811
    %v813 = vpop.f32.mrf.mxu0
    %v814 = vadd.f32 0.0, %v813
    %815 = vdwg.mxu0
    %816 = vmatpush.bf16.msra.mxu0 %v750
    %817 = vmatpush.bf16.msra.mxu0 %v748
    %818 = vmatpush.bf16.msra.mxu0 %v746
    %819 = vmatpush.bf16.msra.mxu0 %v744
    %820 = vmatpush.bf16.msra.mxu0 %v742
    %821 = vmatpush.bf16.msra.mxu0 %v740
    %822 = vmatpush.bf16.msra.mxu0 %v738
    %823 = vmatpush.bf16.msra.mxu0 %v736
    %824 = vmatmul.bf16.gmra.mxu0 %v671
    %v825 = vpop.f32.mrf.mxu0
    %v826 = vadd.f32 0.0, %v825
    %v827 = vpop.f32.mrf.mxu0
    %v828 = vadd.f32 0.0, %v827
    %829 = vmatmul.bf16.gmra.mxu0 %v672
    %v830 = vpop.f32.mrf.mxu0
    %v831 = vadd.f32 0.0, %v830
    %v832 = vpop.f32.mrf.mxu0
    %v833 = vadd.f32 0.0, %v832
    %834 = vmatmul.bf16.gmra.mxu0 %v673
    %v835 = vpop.f32.mrf.mxu0
    %v836 = vadd.f32 0.0, %v835
    %v837 = vpop.f32.mrf.mxu0
    %v838 = vadd.f32 0.0, %v837
    %839 = vmatmul.bf16.gmra.mxu0 %v674
    %v840 = vpop.f32.mrf.mxu0
    %v841 = vadd.f32 0.0, %v840
    %v842 = vpop.f32.mrf.mxu0
    %v843 = vadd.f32 0.0, %v842
    %844 = vmatmul.bf16.gmra.mxu0 %v675
    %v845 = vpop.f32.mrf.mxu0
    %v846 = vadd.f32 0.0, %v845
    %v847 = vpop.f32.mrf.mxu0
    %v848 = vadd.f32 0.0, %v847
    %849 = vmatmul.bf16.gmra.mxu0 %v676
    %v850 = vpop.f32.mrf.mxu0
    %v851 = vadd.f32 0.0, %v850
    %v852 = vpop.f32.mrf.mxu0
    %v853 = vadd.f32 0.0, %v852
    %854 = vmatmul.bf16.gmra.mxu0 %v677
    %v855 = vpop.f32.mrf.mxu0
    %v856 = vadd.f32 0.0, %v855
    %v857 = vpop.f32.mrf.mxu0
    %v858 = vadd.f32 0.0, %v857
    %859 = vmatmul.bf16.gmra.mxu0 %v678
    %v860 = vpop.f32.mrf.mxu0
    %v861 = vadd.f32 0.0, %v860
    %v862 = vpop.f32.mrf.mxu0
    %v863 = vadd.f32 0.0, %v862
    %864 = vdwg.mxu0
    %v865 = vadd.f32 %v517, %v777
    %v866 = vadd.f32 %v566, %v826
    %v867 = vadd.f32 %v519, %v779
    %v868 = vadd.f32 %v568, %v828
    %v869 = vadd.f32 %v522, %v782
    %v870 = vadd.f32 %v571, %v831
    %v871 = vadd.f32 %v524, %v784
    %v872 = vadd.f32 %v573, %v833
    %v873 = vadd.f32 %v527, %v787
    %v874 = vadd.f32 %v576, %v836
    %v875 = vadd.f32 %v529, %v789
    %v876 = vadd.f32 %v578, %v838
    %v877 = vadd.f32 %v532, %v792
    %v878 = vadd.f32 %v581, %v841
    %v879 = vadd.f32 %v534, %v794
    %v880 = vadd.f32 %v583, %v843
    %v881 = vadd.f32 %v537, %v797
    %v882 = vadd.f32 %v586, %v846
    %v883 = vadd.f32 %v539, %v799
    %v884 = vadd.f32 %v588, %v848
    %v885 = vadd.f32 %v542, %v802
    %v886 = vadd.f32 %v591, %v851
    %v887 = vadd.f32 %v544, %v804
    %v888 = vadd.f32 %v593, %v853
    %v889 = vadd.f32 %v547, %v807
    %v890 = vadd.f32 %v596, %v856
    %v891 = vadd.f32 %v549, %v809
    %v892 = vadd.f32 %v598, %v858
    %v893 = vadd.f32 %v552, %v812
    %v894 = vadd.f32 %v601, %v861
    %v895 = vadd.f32 %v554, %v814
    %v896 = vadd.f32 %v603, %v863
    %v897 = vld [vmem:[#allocation2] sm:$0xf]
    %v898 = vld [vmem:[#allocation2 + $0x4] sm:$0xf]
    %v899 = vld [vmem:[#allocation2 + $0x8] sm:$0xf]
    %v900 = vld [vmem:[#allocation2 + $0xc] sm:$0xf]
    %v901 = vld [vmem:[#allocation2 + $0x10] sm:$0xf]
    %v902 = vld [vmem:[#allocation2 + $0x14] sm:$0xf]
    %v903 = vld [vmem:[#allocation2 + $0x18] sm:$0xf]
    %v904 = vld [vmem:[#allocation2 + $0x1c] sm:$0xf]
    %v905 = vld [vmem:[#allocation2 + $0x20] sm:$0xf]
    %v906 = vld [vmem:[#allocation2 + $0x24] sm:$0xf]
    %v907 = vld [vmem:[#allocation2 + $0x28] sm:$0xf]
    %v908 = vld [vmem:[#allocation2 + $0x2c] sm:$0xf]
    %v909 = vld [vmem:[#allocation2 + $0x30] sm:$0xf]
    %v910 = vld [vmem:[#allocation2 + $0x34] sm:$0xf]
    %v911 = vld [vmem:[#allocation2 + $0x38] sm:$0xf]
    %v912 = vld [vmem:[#allocation2 + $0x3c] sm:$0xf]
    %v913 = vld [vmem:[#allocation2 + $0x40] sm:$0xf]
    %v914 = vld [vmem:[#allocation2 + $0x44] sm:$0xf]
    %v915 = vld [vmem:[#allocation2 + $0x48] sm:$0xf]
    %v916 = vld [vmem:[#allocation2 + $0x4c] sm:$0xf]
    %v917 = vld [vmem:[#allocation2 + $0x50] sm:$0xf]
    %v918 = vld [vmem:[#allocation2 + $0x54] sm:$0xf]
    %v919 = vld [vmem:[#allocation2 + $0x58] sm:$0xf]
    %v920 = vld [vmem:[#allocation2 + $0x5c] sm:$0xf]
    %v921 = vld [vmem:[#allocation2 + $0x60] sm:$0xf]
    %v922 = vld [vmem:[#allocation2 + $0x64] sm:$0xf]
    %v923 = vld [vmem:[#allocation2 + $0x68] sm:$0xf]
    %v924 = vld [vmem:[#allocation2 + $0x6c] sm:$0xf]
    %v925 = vpack.c.bf16 %v867, %v865
    %v926 = vpack.c.bf16 %v868, %v866
    %v927 = vpack.c.bf16 %v871, %v869
    %v928 = vpack.c.bf16 %v872, %v870
    %v929 = vpack.c.bf16 %v875, %v873
    %v930 = vpack.c.bf16 %v876, %v874
    %v931 = vpack.c.bf16 %v879, %v877
    %v932 = vpack.c.bf16 %v880, %v878
    %v933 = vpack.c.bf16 %v883, %v881
    %v934 = vpack.c.bf16 %v884, %v882
    %v935 = vpack.c.bf16 %v887, %v885
    %v936 = vpack.c.bf16 %v888, %v886
    %v937 = vpack.c.bf16 %v891, %v889
    %v938 = vpack.c.bf16 %v892, %v890
    %v939 = vpack.c.bf16 %v895, %v893
    %v940 = vpack.c.bf16 %v896, %v894
    %v941 = vld [vmem:[#allocation6] sm:$0x3]
    %v943 = vperm.slane %v941, 0
    %v944 = vperm.slane %v941, 1
    %v975 = vunpack.c.l.b16 %v897
    %v976 = vunpack.c.l.b16 %v898
    %v977 = vunpack.c.l.b16 %v899
    %v978 = vunpack.c.l.b16 %v900
    %v979 = vunpack.c.l.b16 %v901
    %v980 = vunpack.c.l.b16 %v902
    %v981 = vunpack.c.l.b16 %v903
    %v982 = vunpack.c.l.b16 %v904
    %v983 = vunpack.c.l.b16 %v905
    %v984 = vunpack.c.l.b16 %v906
    %v985 = vunpack.c.l.b16 %v907
    %v986 = vunpack.c.l.b16 %v908
    %v987 = vunpack.c.l.b16 %v909
    %v988 = vunpack.c.l.b16 %v910
    %v989 = vunpack.c.l.b16 %v911
    %v990 = vunpack.c.l.b16 %v912
    %v991 = vunpack.c.l.b16 %v913
    %v992 = vunpack.c.l.b16 %v914
    %v993 = vunpack.c.l.b16 %v915
    %v994 = vunpack.c.l.b16 %v916
    %v995 = vunpack.c.l.b16 %v917
    %v996 = vunpack.c.l.b16 %v918
    %v997 = vunpack.c.l.b16 %v919
    %v998 = vunpack.c.l.b16 %v920
    %v999 = vunpack.c.l.b16 %v921
    %v1000 = vunpack.c.l.b16 %v922
    %v1001 = vunpack.c.l.b16 %v923
    %v1002 = vunpack.c.l.b16 %v924
    %v1003 = vpack.c.b16 %v976, %v975
    %v1004 = vpack.c.b16 %v978, %v977
    %v1005 = vpack.c.b16 %v980, %v979
    %v1006 = vpack.c.b16 %v982, %v981
    %v1007 = vpack.c.b16 %v984, %v983
    %v1008 = vpack.c.b16 %v986, %v985
    %v1009 = vpack.c.b16 %v988, %v987
    %v1010 = vpack.c.b16 %v990, %v989
    %v1011 = vpack.c.b16 %v992, %v991
    %v1012 = vpack.c.b16 %v994, %v993
    %v1013 = vpack.c.b16 %v996, %v995
    %v1014 = vpack.c.b16 %v998, %v997
    %v1015 = vpack.c.b16 %v1000, %v999
    %v1016 = vpack.c.b16 %v1002, %v1001
    %1031 = vmatpush.bf16.msra.mxu0 %v939
    %1032 = vmatpush.bf16.msra.mxu0 %v937
    %1033 = vmatpush.bf16.msra.mxu0 %v935
    %1034 = vmatpush.bf16.msra.mxu0 %v933
    %1035 = vmatpush.bf16.msra.mxu0 %v931
    %1036 = vmatpush.bf16.msra.mxu0 %v929
    %1037 = vmatpush.bf16.msra.mxu0 %v927
    %1038 = vmatpush.bf16.msra.mxu0 %v925
    %1039 = vmatmul.bf16.gmra.mxu0 %v1003
    %v1040 = vpop.f32.mrf.mxu0
    %v1041 = vadd.f32 %v943, %v1040
    %v1042 = vpop.f32.mrf.mxu0
    %v1043 = vadd.f32 %v943, %v1042
    %1044 = vmatmul.bf16.gmra.mxu0 %v1004
    %v1045 = vpop.f32.mrf.mxu0
    %v1046 = vadd.f32 %v943, %v1045
    %v1047 = vpop.f32.mrf.mxu0
    %v1048 = vadd.f32 %v943, %v1047
    %1049 = vmatmul.bf16.gmra.mxu0 %v1005
    %v1050 = vpop.f32.mrf.mxu0
    %v1051 = vadd.f32 %v943, %v1050
    %v1052 = vpop.f32.mrf.mxu0
    %v1053 = vadd.f32 %v943, %v1052
    %1054 = vmatmul.bf16.gmra.mxu0 %v1006
    %v1055 = vpop.f32.mrf.mxu0
    %v1056 = vadd.f32 %v943, %v1055
    %v1057 = vpop.f32.mrf.mxu0
    %v1058 = vadd.f32 %v943, %v1057
    %1059 = vmatmul.bf16.gmra.mxu0 %v1007
    %v1060 = vpop.f32.mrf.mxu0
    %v1061 = vadd.f32 %v943, %v1060
    %v1062 = vpop.f32.mrf.mxu0
    %v1063 = vadd.f32 %v943, %v1062
    %1064 = vmatmul.bf16.gmra.mxu0 %v1008
    %v1065 = vpop.f32.mrf.mxu0
    %v1066 = vadd.f32 %v943, %v1065
    %v1067 = vpop.f32.mrf.mxu0
    %v1068 = vadd.f32 %v943, %v1067
    %1069 = vmatmul.bf16.gmra.mxu0 %v1009
    %v1070 = vpop.f32.mrf.mxu0
    %v1071 = vadd.f32 %v943, %v1070
    %v1072 = vpop.f32.mrf.mxu0
    %v1073 = vadd.f32 %v943, %v1072
    %1074 = vmatmul.bf16.gmra.mxu0 %v1010
    %v1075 = vpop.f32.mrf.mxu0
    %v1076 = vadd.f32 %v943, %v1075
    %v1077 = vpop.f32.mrf.mxu0
    %v1078 = vadd.f32 %v943, %v1077
    %1079 = vmatmul.bf16.gmra.mxu0 %v1011
    %v1080 = vpop.f32.mrf.mxu0
    %v1081 = vadd.f32 %v943, %v1080
    %v1082 = vpop.f32.mrf.mxu0
    %v1083 = vadd.f32 %v943, %v1082
    %1084 = vmatmul.bf16.gmra.mxu0 %v1012
    %v1085 = vpop.f32.mrf.mxu0
    %v1086 = vadd.f32 %v943, %v1085
    %v1087 = vpop.f32.mrf.mxu0
    %v1088 = vadd.f32 %v943, %v1087
    %1089 = vmatmul.bf16.gmra.mxu0 %v1013
    %v1090 = vpop.f32.mrf.mxu0
    %v1091 = vadd.f32 %v943, %v1090
    %v1092 = vpop.f32.mrf.mxu0
    %v1093 = vadd.f32 %v943, %v1092
    %1094 = vmatmul.bf16.gmra.mxu0 %v1014
    %v1095 = vpop.f32.mrf.mxu0
    %v1096 = vadd.f32 %v943, %v1095
    %v1097 = vpop.f32.mrf.mxu0
    %v1098 = vadd.f32 %v943, %v1097
    %1099 = vmatmul.bf16.gmra.mxu0 %v1015
    %v1100 = vpop.f32.mrf.mxu0
    %v1101 = vadd.f32 %v943, %v1100
    %v1102 = vpop.f32.mrf.mxu0
    %v1103 = vadd.f32 %v943, %v1102
    %1104 = vmatmul.bf16.gmra.mxu0 %v1016
    %v1105 = vpop.f32.mrf.mxu0
    %v1106 = vadd.f32 %v943, %v1105
    %v1107 = vpop.f32.mrf.mxu0
    %v1108 = vadd.f32 %v943, %v1107
    %1109 = vdwg.mxu0
    %1110 = vmatpush.bf16.msra.mxu0 %v940
    %1111 = vmatpush.bf16.msra.mxu0 %v938
    %1112 = vmatpush.bf16.msra.mxu0 %v936
    %1113 = vmatpush.bf16.msra.mxu0 %v934
    %1114 = vmatpush.bf16.msra.mxu0 %v932
    %1115 = vmatpush.bf16.msra.mxu0 %v930
    %1116 = vmatpush.bf16.msra.mxu0 %v928
    %1117 = vmatpush.bf16.msra.mxu0 %v926
    %1118 = vmatmul.bf16.gmra.mxu0 %v1003
    %v1119 = vpop.f32.mrf.mxu0
    %v1120 = vadd.f32 %v944, %v1119
    %v1121 = vpop.f32.mrf.mxu0
    %v1122 = vadd.f32 %v944, %v1121
    %1123 = vmatmul.bf16.gmra.mxu0 %v1004
    %v1124 = vpop.f32.mrf.mxu0
    %v1125 = vadd.f32 %v944, %v1124
    %v1126 = vpop.f32.mrf.mxu0
    %v1127 = vadd.f32 %v944, %v1126
    %1128 = vmatmul.bf16.gmra.mxu0 %v1005
    %v1129 = vpop.f32.mrf.mxu0
    %v1130 = vadd.f32 %v944, %v1129
    %v1131 = vpop.f32.mrf.mxu0
    %v1132 = vadd.f32 %v944, %v1131
    %1133 = vmatmul.bf16.gmra.mxu0 %v1006
    %v1134 = vpop.f32.mrf.mxu0
    %v1135 = vadd.f32 %v944, %v1134
    %v1136 = vpop.f32.mrf.mxu0
    %v1137 = vadd.f32 %v944, %v1136
    %1138 = vmatmul.bf16.gmra.mxu0 %v1007
    %v1139 = vpop.f32.mrf.mxu0
    %v1140 = vadd.f32 %v944, %v1139
    %v1141 = vpop.f32.mrf.mxu0
    %v1142 = vadd.f32 %v944, %v1141
    %1143 = vmatmul.bf16.gmra.mxu0 %v1008
    %v1144 = vpop.f32.mrf.mxu0
    %v1145 = vadd.f32 %v944, %v1144
    %v1146 = vpop.f32.mrf.mxu0
    %v1147 = vadd.f32 %v944, %v1146
    %1148 = vmatmul.bf16.gmra.mxu0 %v1009
    %v1149 = vpop.f32.mrf.mxu0
    %v1150 = vadd.f32 %v944, %v1149
    %v1151 = vpop.f32.mrf.mxu0
    %v1152 = vadd.f32 %v944, %v1151
    %1153 = vmatmul.bf16.gmra.mxu0 %v1010
    %v1154 = vpop.f32.mrf.mxu0
    %v1155 = vadd.f32 %v944, %v1154
    %v1156 = vpop.f32.mrf.mxu0
    %v1157 = vadd.f32 %v944, %v1156
    %1158 = vmatmul.bf16.gmra.mxu0 %v1011
    %v1159 = vpop.f32.mrf.mxu0
    %v1160 = vadd.f32 %v944, %v1159
    %v1161 = vpop.f32.mrf.mxu0
    %v1162 = vadd.f32 %v944, %v1161
    %1163 = vmatmul.bf16.gmra.mxu0 %v1012
    %v1164 = vpop.f32.mrf.mxu0
    %v1165 = vadd.f32 %v944, %v1164
    %v1166 = vpop.f32.mrf.mxu0
    %v1167 = vadd.f32 %v944, %v1166
    %1168 = vmatmul.bf16.gmra.mxu0 %v1013
    %v1169 = vpop.f32.mrf.mxu0
    %v1170 = vadd.f32 %v944, %v1169
    %v1171 = vpop.f32.mrf.mxu0
    %v1172 = vadd.f32 %v944, %v1171
    %1173 = vmatmul.bf16.gmra.mxu0 %v1014
    %v1174 = vpop.f32.mrf.mxu0
    %v1175 = vadd.f32 %v944, %v1174
    %v1176 = vpop.f32.mrf.mxu0
    %v1177 = vadd.f32 %v944, %v1176
    %1178 = vmatmul.bf16.gmra.mxu0 %v1015
    %v1179 = vpop.f32.mrf.mxu0
    %v1180 = vadd.f32 %v944, %v1179
    %v1181 = vpop.f32.mrf.mxu0
    %v1182 = vadd.f32 %v944, %v1181
    %1183 = vmatmul.bf16.gmra.mxu0 %v1016
    %v1184 = vpop.f32.mrf.mxu0
    %v1185 = vadd.f32 %v944, %v1184
    %v1186 = vpop.f32.mrf.mxu0
    %v1187 = vadd.f32 %v944, %v1186
    %1188 = vdwg.mxu0
    %v1189 = vmax.f32 %v1041, 0.0
    %v1190 = vmax.f32 %v1120, 0.0
    %v1191 = vmax.f32 %v1043, 0.0
    %v1192 = vmax.f32 %v1122, 0.0
    %v1193 = vmax.f32 %v1046, 0.0
    %v1194 = vmax.f32 %v1125, 0.0
    %v1195 = vmax.f32 %v1048, 0.0
    %v1196 = vmax.f32 %v1127, 0.0
    %v1197 = vmax.f32 %v1051, 0.0
    %v1198 = vmax.f32 %v1130, 0.0
    %v1199 = vmax.f32 %v1053, 0.0
    %v1200 = vmax.f32 %v1132, 0.0
    %v1201 = vmax.f32 %v1056, 0.0
    %v1202 = vmax.f32 %v1135, 0.0
    %v1203 = vmax.f32 %v1058, 0.0
    %v1204 = vmax.f32 %v1137, 0.0
    %v1205 = vmax.f32 %v1061, 0.0
    %v1206 = vmax.f32 %v1140, 0.0
    %v1207 = vmax.f32 %v1063, 0.0
    %v1208 = vmax.f32 %v1142, 0.0
    %v1209 = vmax.f32 %v1066, 0.0
    %v1210 = vmax.f32 %v1145, 0.0
    %v1211 = vmax.f32 %v1068, 0.0
    %v1212 = vmax.f32 %v1147, 0.0
    %v1213 = vmax.f32 %v1071, 0.0
    %v1214 = vmax.f32 %v1150, 0.0
    %v1215 = vmax.f32 %v1073, 0.0
    %v1216 = vmax.f32 %v1152, 0.0
    %v1217 = vmax.f32 %v1076, 0.0
    %v1218 = vmax.f32 %v1155, 0.0
    %v1219 = vmax.f32 %v1078, 0.0
    %v1220 = vmax.f32 %v1157, 0.0
    %v1221 = vmax.f32 %v1081, 0.0
    %v1222 = vmax.f32 %v1160, 0.0
    %v1223 = vmax.f32 %v1083, 0.0
    %v1224 = vmax.f32 %v1162, 0.0
    %v1225 = vmax.f32 %v1086, 0.0
    %v1226 = vmax.f32 %v1165, 0.0
    %v1227 = vmax.f32 %v1088, 0.0
    %v1228 = vmax.f32 %v1167, 0.0
    %v1229 = vmax.f32 %v1091, 0.0
    %v1230 = vmax.f32 %v1170, 0.0
    %v1231 = vmax.f32 %v1093, 0.0
    %v1232 = vmax.f32 %v1172, 0.0
    %v1233 = vmax.f32 %v1096, 0.0
    %v1234 = vmax.f32 %v1175, 0.0
    %v1235 = vmax.f32 %v1098, 0.0
    %v1236 = vmax.f32 %v1177, 0.0
    %v1237 = vmax.f32 %v1101, 0.0
    %v1238 = vmax.f32 %v1180, 0.0
    %v1239 = vmax.f32 %v1103, 0.0
    %v1240 = vmax.f32 %v1182, 0.0
    %v1241 = vmax.f32 %v1106, 0.0
    %v1242 = vmax.f32 %v1185, 0.0
    %v1243 = vmax.f32 %v1108, 0.0
    %v1244 = vmax.f32 %v1187, 0.0
    %v1245 = vld [vmem:[#allocation8] sm:$0x3]
    %v1246 = vpack.c.bf16 %v1191, %v1189
    %v1247 = vpack.c.bf16 %v1192, %v1190
    %v1248 = vpack.c.bf16 %v1195, %v1193
    %v1249 = vpack.c.bf16 %v1196, %v1194
    %v1250 = vpack.c.bf16 %v1199, %v1197
    %v1251 = vpack.c.bf16 %v1200, %v1198
    %v1252 = vpack.c.bf16 %v1203, %v1201
    %v1253 = vpack.c.bf16 %v1204, %v1202
    %v1254 = vpack.c.bf16 %v1207, %v1205
    %v1255 = vpack.c.bf16 %v1208, %v1206
    %v1256 = vpack.c.bf16 %v1211, %v1209
    %v1257 = vpack.c.bf16 %v1212, %v1210
    %v1258 = vpack.c.bf16 %v1215, %v1213
    %v1259 = vpack.c.bf16 %v1216, %v1214
    %v1260 = vpack.c.bf16 %v1219, %v1217
    %v1261 = vpack.c.bf16 %v1220, %v1218
    %v1262 = vpack.c.bf16 %v1223, %v1221
    %v1263 = vpack.c.bf16 %v1224, %v1222
    %v1264 = vpack.c.bf16 %v1227, %v1225
    %v1265 = vpack.c.bf16 %v1228, %v1226
    %v1266 = vpack.c.bf16 %v1231, %v1229
    %v1267 = vpack.c.bf16 %v1232, %v1230
    %v1268 = vpack.c.bf16 %v1235, %v1233
    %v1269 = vpack.c.bf16 %v1236, %v1234
    %v1270 = vpack.c.bf16 %v1239, %v1237
    %v1271 = vpack.c.bf16 %v1240, %v1238
    %v1272 = vpack.c.bf16 %v1243, %v1241
    %v1273 = vpack.c.bf16 %v1244, %v1242
    %1275 = vst [vmem:[#allocation1] ss:$9 sm:$0xff] %v1245
    %v1276 = vld [vmem:[#allocation1] sm:$0xff]
    %v1277 = vld [vmem:[#allocation1 + $0x9] sm:$0xff]
    %vm1279 = vcmask 785408
    %v1280 = vsel %vm1279, %v1277, 0
    %1282 = vmatpush.bf16.msra.mxu0 %v1260
    %1283 = vmatpush.bf16.msra.mxu0 %v1258
    %1284 = vmatpush.bf16.msra.mxu0 %v1256
    %1285 = vmatpush.bf16.msra.mxu0 %v1254
    %1286 = vmatpush.bf16.msra.mxu0 %v1252
    %1287 = vmatpush.bf16.msra.mxu0 %v1250
    %1288 = vmatpush.bf16.msra.mxu0 %v1248
    %1289 = vmatpush.bf16.msra.mxu0 %v1246
    %1290 = vmatmul.bf16.gmra.mxu0 %v1276
    %v1291 = vpop.f32.mrf.mxu0
    %v1292 = vadd.f32 0.0, %v1291
    %v1293 = vpop.f32.mrf.mxu0
    %1294 = vdwg.mxu0
    %1295 = vmatpush.bf16.msra.mxu0 0
    %1296 = vmatpush.bf16.msra.mxu0 0
    %1297 = vmatpush.bf16.msra.mxu0 %v1272
    %1298 = vmatpush.bf16.msra.mxu0 %v1270
    %1299 = vmatpush.bf16.msra.mxu0 %v1268
    %1300 = vmatpush.bf16.msra.mxu0 %v1266
    %1301 = vmatpush.bf16.msra.mxu0 %v1264
    %1302 = vmatpush.bf16.msra.mxu0 %v1262
    %1303 = vmatmul.bf16.gmra.mxu0 %v1280
    %v1304 = vpop.f32.mrf.mxu0
    %v1305 = vadd.f32 %v1292, %v1304
    %v1306 = vpop.f32.mrf.mxu0
    %1307 = vdwg.mxu0
    %1308 = vmatpush.bf16.msra.mxu0 %v1261
    %1309 = vmatpush.bf16.msra.mxu0 %v1259
    %1310 = vmatpush.bf16.msra.mxu0 %v1257
    %1311 = vmatpush.bf16.msra.mxu0 %v1255
    %1312 = vmatpush.bf16.msra.mxu0 %v1253
    %1313 = vmatpush.bf16.msra.mxu0 %v1251
    %1314 = vmatpush.bf16.msra.mxu0 %v1249
    %1315 = vmatpush.bf16.msra.mxu0 %v1247
    %1316 = vmatmul.bf16.gmra.mxu0 %v1276
    %v1317 = vpop.f32.mrf.mxu0
    %v1318 = vadd.f32 0.0, %v1317
    %v1319 = vpop.f32.mrf.mxu0
    %1320 = vdwg.mxu0
    %1321 = vmatpush.bf16.msra.mxu0 0
    %1322 = vmatpush.bf16.msra.mxu0 0
    %1323 = vmatpush.bf16.msra.mxu0 %v1273
    %1324 = vmatpush.bf16.msra.mxu0 %v1271
    %1325 = vmatpush.bf16.msra.mxu0 %v1269
    %1326 = vmatpush.bf16.msra.mxu0 %v1267
    %1327 = vmatpush.bf16.msra.mxu0 %v1265
    %1328 = vmatpush.bf16.msra.mxu0 %v1263
    %1329 = vmatmul.bf16.gmra.mxu0 %v1280
    %v1330 = vpop.f32.mrf.mxu0
    %v1331 = vadd.f32 %v1318, %v1330
    %v1332 = vpop.f32.mrf.mxu0
    %1333 = vdwg.mxu0
    %v1334 = vpack.c.bf16 %v1305, %v1305
    %v1335 = vpack.c.bf16 %v1331, %v1331
    %v1336 = vld [vmem:[%s4] sm:$0xf]
    %v1337 = vld [vmem:[%s4 + $0x4] sm:$0xf]
    %v1338 = vld [vmem:[%s4 + $0x8] sm:$0xf]
    %v1339 = vld [vmem:[%s4 + $0xc] sm:$0xf]
    %v1340 = vld [vmem:[%s4 + $0x10] sm:$0xf]
    %v1341 = vld [vmem:[%s4 + $0x14] sm:$0xf]
    %v1342 = vld [vmem:[%s4 + $0x18] sm:$0xf]
    %v1343 = vld [vmem:[%s4 + $0x1c] sm:$0xf]
    %v1344 = vld [vmem:[%s4 + $0x20] sm:$0xf]
    %v1345 = vld [vmem:[%s4 + $0x24] sm:$0xf]
    %v1346 = vld [vmem:[%s4 + $0x28] sm:$0xf]
    %v1347 = vld [vmem:[%s4 + $0x2c] sm:$0xf]
    %v1348 = vld [vmem:[%s4 + $0x30] sm:$0xf]
    %v1349 = vld [vmem:[%s4 + $0x34] sm:$0xf]
    %v1350 = vld [vmem:[%s4 + $0x38] sm:$0xf]
    %v1351 = vld [vmem:[%s4 + $0x3c] sm:$0xf]
    %v1352 = vld [vmem:[%s4 + $0x40] sm:$0xf]
    %v1353 = vld [vmem:[%s4 + $0x44] sm:$0xf]
    %v1354 = vld [vmem:[%s4 + $0x48] sm:$0xf]
    %v1355 = vld [vmem:[%s4 + $0x4c] sm:$0xf]
    %v1356 = vld [vmem:[%s4 + $0x50] sm:$0xf]
    %v1357 = vld [vmem:[%s4 + $0x54] sm:$0xf]
    %v1358 = vld [vmem:[%s4 + $0x58] sm:$0xf]
    %v1359 = vld [vmem:[%s4 + $0x5c] sm:$0xf]
    %v1360 = vld [vmem:[%s4 + $0x60] sm:$0xf]
    %v1361 = vld [vmem:[%s4 + $0x64] sm:$0xf]
    %v1362 = vld [vmem:[%s4 + $0x68] sm:$0xf]
    %v1363 = vld [vmem:[%s4 + $0x6c] sm:$0xf]
    %v1364 = vld [vmem:[%s4 + $0x70] sm:$0xf]
    %v1365 = vld [vmem:[%s4 + $0x74] sm:$0xf]
    %v1366 = vld [vmem:[%s4 + $0x78] sm:$0xf]
    %v1367 = vld [vmem:[%s4 + $0x7c] sm:$0xf]
    %v1400 = vunpack.c.l.b16 %v1336
    %v1401 = vunpack.c.l.b16 %v1337
    %v1402 = vunpack.c.l.b16 %v1338
    %v1403 = vunpack.c.l.b16 %v1339
    %v1404 = vunpack.c.l.b16 %v1340
    %v1405 = vunpack.c.l.b16 %v1341
    %v1406 = vunpack.c.l.b16 %v1342
    %v1407 = vunpack.c.l.b16 %v1343
    %v1408 = vunpack.c.l.b16 %v1344
    %v1409 = vunpack.c.l.b16 %v1345
    %v1410 = vunpack.c.l.b16 %v1346
    %v1411 = vunpack.c.l.b16 %v1347
    %v1412 = vunpack.c.l.b16 %v1348
    %v1413 = vunpack.c.l.b16 %v1349
    %v1414 = vunpack.c.l.b16 %v1350
    %v1415 = vunpack.c.l.b16 %v1351
    %v1416 = vunpack.c.l.b16 %v1352
    %v1417 = vunpack.c.l.b16 %v1353
    %v1418 = vunpack.c.l.b16 %v1354
    %v1419 = vunpack.c.l.b16 %v1355
    %v1420 = vunpack.c.l.b16 %v1356
    %v1421 = vunpack.c.l.b16 %v1357
    %v1422 = vunpack.c.l.b16 %v1358
    %v1423 = vunpack.c.l.b16 %v1359
    %v1424 = vunpack.c.l.b16 %v1360
    %v1425 = vunpack.c.l.b16 %v1361
    %v1426 = vunpack.c.l.b16 %v1362
    %v1427 = vunpack.c.l.b16 %v1363
    %v1428 = vunpack.c.l.b16 %v1364
    %v1429 = vunpack.c.l.b16 %v1365
    %v1430 = vunpack.c.l.b16 %v1366
    %v1431 = vunpack.c.l.b16 %v1367
    %v1432 = vpack.c.b16 %v1401, %v1400
    %v1433 = vpack.c.b16 %v1403, %v1402
    %v1434 = vpack.c.b16 %v1405, %v1404
    %v1435 = vpack.c.b16 %v1407, %v1406
    %v1436 = vpack.c.b16 %v1409, %v1408
    %v1437 = vpack.c.b16 %v1411, %v1410
    %v1438 = vpack.c.b16 %v1413, %v1412
    %v1439 = vpack.c.b16 %v1415, %v1414
    %v1440 = vpack.c.b16 %v1417, %v1416
    %v1441 = vpack.c.b16 %v1419, %v1418
    %v1442 = vpack.c.b16 %v1421, %v1420
    %v1443 = vpack.c.b16 %v1423, %v1422
    %v1444 = vpack.c.b16 %v1425, %v1424
    %v1445 = vpack.c.b16 %v1427, %v1426
    %v1446 = vpack.c.b16 %v1429, %v1428
    %v1447 = vpack.c.b16 %v1431, %v1430
    %1464 = vmatpush.bf16.msra.mxu0 %v1439
    %1465 = vmatpush.bf16.msra.mxu0 %v1438
    %1466 = vmatpush.bf16.msra.mxu0 %v1437
    %1467 = vmatpush.bf16.msra.mxu0 %v1436
    %1468 = vmatpush.bf16.msra.mxu0 %v1435
    %1469 = vmatpush.bf16.msra.mxu0 %v1434
    %1470 = vmatpush.bf16.msra.mxu0 %v1433
    %1471 = vmatpush.bf16.msra.mxu0 %v1432
    %1472 = vmatmul.bf16.gmra.mxu0 %v1334
    %v1473 = vpop.f32.mrf.mxu0
    %v1474 = vadd.f32 0.0, %v1473
    %v1475 = vpop.f32.mrf.mxu0
    %1476 = vdwg.mxu0
    %1477 = vmatpush.bf16.msra.mxu0 %v1447
    %1478 = vmatpush.bf16.msra.mxu0 %v1446
    %1479 = vmatpush.bf16.msra.mxu0 %v1445
    %1480 = vmatpush.bf16.msra.mxu0 %v1444
    %1481 = vmatpush.bf16.msra.mxu0 %v1443
    %1482 = vmatpush.bf16.msra.mxu0 %v1442
    %1483 = vmatpush.bf16.msra.mxu0 %v1441
    %1484 = vmatpush.bf16.msra.mxu0 %v1440
    %1485 = vmatmul.bf16.gmra.mxu0 %v1335
    %v1486 = vpop.f32.mrf.mxu0
    %v1487 = vadd.f32 %v1474, %v1486
    %v1488 = vpop.f32.mrf.mxu0
    %1489 = vdwg.mxu0
    %v1490 = vmul.f32 %v1487, %v1487
    %vm1491 = vcmask 1040384
    %v1492 = vsel %vm1491, %v1490, 0.0
    %1493 = vadd.xlane.f32.xlu0 %v1492
    %v1494 = vpop.xlane.xlu0 %1493
    %v1495 = vadd.f32 %v1494, 1e-12
    %v1496 = vrsqrt.pop %v1495
    %v1497 = vmul.f32 %v1496, %v1495
    %v1498 = vmul.f32 %v1497, %v1496
    %v1499 = vmul.f32 0.5, %v1498
    %v1500 = vsub.f32 1.5, %v1499
    %v1501 = vmul.f32 %v1496, %v1500
    %vm1502 = vweird.f32 %v1495
    %vm1503 = vweird.f32 %v1496
    %vm1504 = vmor %vm1502, %vm1503
    %v1505 = vsel %vm1504, %v1496, %v1501
    %v1506 = vmul.f32 %v1487, %v1505
    %v1507 = vpack.c.bf16 %v1506, %v1506
    %v1508 = vld [vmem:[%s6] sm:$0xf]
    %v1509 = vld [vmem:[%s6 + $0x4] sm:$0xf]
    %v1510 = vld [vmem:[%s6 + $0x8] sm:$0xf]
    %v1511 = vld [vmem:[%s6 + $0xc] sm:$0xf]
    %v1512 = vld [vmem:[%s6 + $0x10] sm:$0xf]
    %v1513 = vld [vmem:[%s6 + $0x14] sm:$0xf]
    %v1514 = vld [vmem:[%s6 + $0x18] sm:$0xf]
    %v1515 = vld [vmem:[%s6 + $0x1c] sm:$0xf]
    %v1516 = vld [vmem:[%s6 + $0x20] sm:$0xf]
    %v1517 = vld [vmem:[%s6 + $0x24] sm:$0xf]
    %v1518 = vld [vmem:[%s6 + $0x28] sm:$0xf]
    %v1519 = vld [vmem:[%s6 + $0x2c] sm:$0xf]
    %v1520 = vld [vmem:[%s6 + $0x30] sm:$0xf]
    %v1521 = vld [vmem:[%s6 + $0x34] sm:$0xf]
    %v1522 = vld [vmem:[%s6 + $0x38] sm:$0xf]
    %v1523 = vld [vmem:[%s6 + $0x3c] sm:$0xf]
    %v1540 = vunpack.c.l.b16 %v1508
    %v1541 = vunpack.c.l.b16 %v1509
    %v1542 = vunpack.c.l.b16 %v1510
    %v1543 = vunpack.c.l.b16 %v1511
    %v1544 = vunpack.c.l.b16 %v1512
    %v1545 = vunpack.c.l.b16 %v1513
    %v1546 = vunpack.c.l.b16 %v1514
    %v1547 = vunpack.c.l.b16 %v1515
    %v1548 = vunpack.c.l.b16 %v1516
    %v1549 = vunpack.c.l.b16 %v1517
    %v1550 = vunpack.c.l.b16 %v1518
    %v1551 = vunpack.c.l.b16 %v1519
    %v1552 = vunpack.c.l.b16 %v1520
    %v1553 = vunpack.c.l.b16 %v1521
    %v1554 = vunpack.c.l.b16 %v1522
    %v1555 = vunpack.c.l.b16 %v1523
    %v1556 = vpack.c.b16 %v1541, %v1540
    %v1557 = vpack.c.b16 %v1543, %v1542
    %v1558 = vpack.c.b16 %v1545, %v1544
    %v1559 = vpack.c.b16 %v1547, %v1546
    %v1560 = vpack.c.b16 %v1549, %v1548
    %v1561 = vpack.c.b16 %v1551, %v1550
    %v1562 = vpack.c.b16 %v1553, %v1552
    %v1563 = vpack.c.b16 %v1555, %v1554
    %1572 = vmatpush.bf16.msra.mxu0 %v1563
    %1573 = vmatpush.bf16.msra.mxu0 %v1562
    %1574 = vmatpush.bf16.msra.mxu0 %v1561
    %1575 = vmatpush.bf16.msra.mxu0 %v1560
    %1576 = vmatpush.bf16.msra.mxu0 %v1559
    %1577 = vmatpush.bf16.msra.mxu0 %v1558
    %1578 = vmatpush.bf16.msra.mxu0 %v1557
    %1579 = vmatpush.bf16.msra.mxu0 %v1556
    %1580 = vmatmul.bf16.gmra.mxu0 %v1507
    %v1581 = vpop.f32.mrf.mxu0
    %v1582 = vadd.f32 0.0, %v1581
    %v1583 = vpop.f32.mrf.mxu0
    %1584 = vdwg.mxu0
    %s1585 = sld [smem:[#allocation9]]
    %s1586 = sld [smem:[#allocation9 + $0x1]]
    %v1587 = vstv %s1586
    %v1588 = vmul.f32 %v1587, %v1582
    %v1589 = vstv %s1585
    %v1590 = vsub.f32 %v1589, %v1588
    %1591 = vst [vmem:[#allocation10] sm:$0x1] %v1590
    // Predicated region
    $region50: #{_clip_loss_forward.1} parent=1 // pred_check
      _
    $region51: #{_clip_loss_forward.1} parent=1 // pred_check_branch
      %1593 = sbr.rel (0) target = $region53
    $region52: #{_clip_loss_forward.1} parent=1 // pred_region
      %1595 = vsyncadd [#allocation4], 0
      %s1597 = sshll.u32 [#allocation10], 4
      %s1598 = int_to_ptr.vmem [resolvable:$true] %s1597
      %s1599 = sshll.u32 %s8, 4
      %s1600 = int_to_ptr.hbm [resolvable:$true] %s1599
      %1602 = dma.vmem_to_hbm [thread:$0]  %s1598, 16, %s1600, [#allocation4]
    $region53: #{_clip_loss_forward.1} parent=1 // pred_fallthru
      _
    // Predicated region
    $region54: #{_clip_loss_forward.1} parent=1 // pred_check
      _
    $region55: #{_clip_loss_forward.1} parent=1 // pred_check_branch
      %1604 = sbr.rel (0) target = $region57
    $region56: #{_clip_loss_forward.1} parent=1 // pred_region
      %1606 = dma.done [#allocation4], 16
    $region57: #{_clip_loss_forward.1} parent=1 // pred_fallthru
      _
    %1607 = vsyncpa [#allocation3], 1
    %1608 = vsyncpa [#allocation7], 1
    %1609 = vsyncpa [#allocation4], 1
    %1610 = vsyncpa [#allocation5], 1

</llo_original>
